<compile_context>
chip_gen: v7x
topology: tpu7x:2x2x1
jax: 0.10.0
libtpu: 0.0.40
codegen_flags: <defaults>
</compile_context>

<pallas_src>
import math
import jax
import jax.numpy as jnp
from jax import lax
from jax.experimental import pallas as pl
from jax.experimental.pallas import tpu as pltpu

# ---- config (small, consistent with the module) ----
B, T, E = 2, 8, 32          # batch, seq, emb_dim
H, KV = 4, 2                # n_heads, n_kv_groups
DH = E // H                 # head_dim = 8
GS = H // KV                # group_size = 2
HID = 64                    # hidden_dim
ROPE_BASE = 10000.0
EPS = 1e-5

BT = B * T                  # rows processed in one shot
HB = H * B                  # attention batch: (head, batch) pairs
SCALE = 1.0 / math.sqrt(DH)
NEG = jnp.float32(-1e30)    # finite "-inf" (robust if T is ever padded/tiled)


def _rope_tables(head_dim, theta_base, seq_len):
    # same math as precompute_rope_params (freq_config=None), kept in f32
    inv_freq = 1.0 / (theta_base ** (jnp.arange(0, head_dim, 2, dtype=jnp.float32) / head_dim))
    pos = jnp.arange(seq_len, dtype=jnp.float32)
    angles = pos[:, None] * inv_freq[None, :]
    angles = jnp.concatenate([angles, angles], axis=1)          # (T, head_dim)
    return jnp.cos(angles), jnp.sin(angles)


def transformer_block_kernel(x_ref, wqkv_ref, wo_ref, w12_ref, w3_ref,
                             g1_ref, g2_ref, cos_ref, sin_ref, mask_ref, o_ref):
    x = x_ref[...]                                               # (BT, E) f32

    # ---- RMSNorm 1 (f32), cast to bf16 only at the MXU input ----
    ms = jnp.mean(x * x, axis=-1, keepdims=True)
    xa = (x * lax.rsqrt(ms + EPS) * g1_ref[...]).astype(jnp.bfloat16)

    # ---- fused Q|K|V projection: one MXU pass instead of three ----
    qkv = jnp.dot(xa, wqkv_ref[...], preferred_element_type=jnp.float32)   # (BT, (H+2KV)*DH) f32
    qkv = qkv.reshape(B, T, (H + 2 * KV) * DH)                   # leading split only (no lane movement)

    # gather heads onto a leading batch axis n = h*B + b; GQA expansion via group h//GS
    def take(cols):
        return jnp.concatenate(
            [qkv[..., c * DH:(c + 1) * DH] for c in cols], axis=0)          # (HB, T, DH) f32

    q_h = take(list(range(H)))                                   # q head h
    k_h = take([H + h // GS for h in range(H)])                  # k group of head h
    v_h = take([H + KV + h // GS for h in range(H)])             # v group of head h

    # ---- RoPE (f32), applied once to all Q heads and once to all K heads ----
    cos = cos_ref[...][None]                                     # (1, T, DH)
    sin = sin_ref[...][None]

    def rope(t):
        rot = jnp.concatenate([-t[..., DH // 2:], t[..., :DH // 2]], axis=-1)
        return t * cos + rot * sin

    q_h = rope(q_h).astype(jnp.bfloat16)
    k_h = rope(k_h).astype(jnp.bfloat16)
    v_h = v_h.astype(jnp.bfloat16)

    # ---- batched attention over all (head, batch) pairs: 2 MXU passes total ----
    s = jnp.einsum('nqd,nkd->nqk', q_h, k_h,
                   preferred_element_type=jnp.float32)           # (HB, T, T) f32
    s = s * SCALE + mask_ref[...][None]                          # precomputed additive causal mask
    w = jax.nn.softmax(s, axis=-1)                               # f32
    ctx = jnp.einsum('nqk,nkd->nqd', w.astype(jnp.bfloat16), v_h,
                     preferred_element_type=jnp.float32)         # (HB, T, DH) f32

    # reassemble heads along the lane axis -> (BT, E); head h occupies columns [h*DH, (h+1)*DH)
    context = jnp.concatenate([ctx[h * B:(h + 1) * B] for h in range(H)],
                              axis=-1).reshape(BT, E)
    attn_out = jnp.dot(context.astype(jnp.bfloat16), wo_ref[...],
                       preferred_element_type=jnp.float32)       # (BT, E) f32

    # ---- residual 1 ----
    x_mid = x + attn_out

    # ---- RMSNorm 2 (f32) ----
    ms2 = jnp.mean(x_mid * x_mid, axis=-1, keepdims=True)
    xf = (x_mid * lax.rsqrt(ms2 + EPS) * g2_ref[...]).astype(jnp.bfloat16)

    # ---- SwiGLU FF with fused fc1|fc2 (single matmul, 128-lane-wide output) ----
    h12 = jnp.dot(xf, w12_ref[...], preferred_element_type=jnp.float32)     # (BT, 2*HID) f32
    hs = (jax.nn.silu(h12[:, :HID]) * h12[:, HID:]).astype(jnp.bfloat16)
    ff = jnp.dot(hs, w3_ref[...], preferred_element_type=jnp.float32)       # (BT, E) f32

    # ---- residual 2 ----
    o_ref[...] = x_mid + ff


@jax.jit
def transformer_block(x, params):
    wq, wk, wv, wo, w1, w2, w3, g1, g2, cos, sin = params
    # weight fusion done once in the wrapper (XLA side)
    wqkv = jnp.concatenate([wq, wk, wv], axis=1)                 # (E, E + 2*KV*DH) = (32, 64)
    w12 = jnp.concatenate([w1, w2], axis=1)                      # (E, 2*HID) = (32, 128)
    # precomputed additive causal mask (hoisted out of the kernel)
    mask = jnp.where(jnp.arange(T)[None, :] > jnp.arange(T)[:, None], NEG, jnp.float32(0.0))

    vmem = lambda: pl.BlockSpec(memory_space=pltpu.MemorySpace.VMEM)  # full-array VMEM blocks, no grid
    out2d = pl.pallas_call(
        transformer_block_kernel,
        out_shape=jax.ShapeDtypeStruct((BT, E), jnp.float32),
        in_specs=[vmem() for _ in range(10)],
        out_specs=vmem(),
    )(x.reshape(BT, E), wqkv, wo, w12, w3, g1, g2, cos, sin, mask)
    return out2d.reshape(B, T, E)


def transformer_block_ref(x, params):
    """Pure-JAX reference mirroring the PyTorch module's forward."""
    wq, wk, wv, wo, w1, w2, w3, g1, g2, cos, sin = params
    ms = jnp.mean(x * x, axis=-1, keepdims=True)
    xa = (x * lax.rsqrt(ms + EPS) * g1[0]).astype(jnp.bfloat16)
    q = jnp.einsum('bte,eo->bto', xa, wq, preferred_element_type=jnp.float32)
    k = jnp.einsum('bte,eo->bto', xa, wk, preferred_element_type=jnp.float32)
    v = jnp.einsum('bte,eo->bto', xa, wv, preferred_element_type=jnp.float32)
    q = q.reshape(B, T, H, DH).transpose(0, 2, 1, 3)
    k = k.reshape(B, T, KV, DH).transpose(0, 2, 1, 3)
    v = v.reshape(B, T, KV, DH).transpose(0, 2, 1, 3)

    def rope(t):
        rot = jnp.concatenate([-t[..., DH // 2:], t[..., :DH // 2]], axis=-1)
        return t * cos[None, None] + rot * sin[None, None]

    q, k = rope(q), rope(k)
    k = jnp.repeat(k, GS, axis=1)
    v = jnp.repeat(v, GS, axis=1)
    s = jnp.einsum('bhqd,bhkd->bhqk', q.astype(jnp.bfloat16), k.astype(jnp.bfloat16),
                   preferred_element_type=jnp.float32)
    causal = jnp.arange(T)[None, :] > jnp.arange(T)[:, None]
    s = jnp.where(causal[None, None], -jnp.inf, s)
    w = jax.nn.softmax(s / math.sqrt(DH), axis=-1)
    ctx = jnp.einsum('bhqk,bhkd->bhqd', w.astype(jnp.bfloat16), v.astype(jnp.bfloat16),
                     preferred_element_type=jnp.float32)
    ctx = ctx.transpose(0, 2, 1, 3).reshape(B, T, E)
    attn = jnp.einsum('bte,eo->bto', ctx.astype(jnp.bfloat16), wo, preferred_element_type=jnp.float32)
    x_mid = x + attn
    ms2 = jnp.mean(x_mid * x_mid, axis=-1, keepdims=True)
    xf = (x_mid * lax.rsqrt(ms2 + EPS) * g2[0]).astype(jnp.bfloat16)
    h1 = jnp.einsum('bte,eh->bth', xf, w1, preferred_element_type=jnp.float32)
    h2 = jnp.einsum('bte,eh->bth', xf, w2, preferred_element_type=jnp.float32)
    hs = (jax.nn.silu(h1) * h2).astype(jnp.bfloat16)
    ff = jnp.einsum('bth,he->bte', hs, w3, preferred_element_type=jnp.float32)
    return x_mid + ff


if __name__ == "__main__":
    key = jax.random.PRNGKey(0)
    ks = jax.random.split(key, 8)

    # deterministic synthetic parameters (bf16 linears, f32 RMSNorm weights = ones)
    std = 0.05
    wq = (jax.random.normal(ks[0], (E, E), jnp.float32) * std).astype(jnp.bfloat16)
    wk = (jax.random.normal(ks[1], (E, KV * DH), jnp.float32) * std).astype(jnp.bfloat16)
    wv = (jax.random.normal(ks[2], (E, KV * DH), jnp.float32) * std).astype(jnp.bfloat16)
    wo = (jax.random.normal(ks[3], (E, E), jnp.float32) * std).astype(jnp.bfloat16)
    w1 = (jax.random.normal(ks[4], (E, HID), jnp.float32) * std).astype(jnp.bfloat16)
    w2 = (jax.random.normal(ks[5], (E, HID), jnp.float32) * std).astype(jnp.bfloat16)
    w3 = (jax.random.normal(ks[6], (HID, E), jnp.float32) * std).astype(jnp.bfloat16)
    g1 = jnp.ones((1, E), jnp.float32)
    g2 = jnp.ones((1, E), jnp.float32)
    cos, sin = _rope_tables(DH, ROPE_BASE, T)
    x = jax.random.normal(ks[7], (B, T, E), jnp.float32)
    params = (wq, wk, wv, wo, w1, w2, w3, g1, g2, cos, sin)

    out = jax.block_until_ready(transformer_block(x, params))
    ref = jax.block_until_ready(transformer_block_ref(x, params))

    assert out.shape == (B, T, E) and out.dtype == jnp.float32
    assert bool(jnp.all(jnp.isfinite(out)))
    assert bool(jnp.allclose(out, ref, atol=2e-2, rtol=2e-2)), float(jnp.max(jnp.abs(out - ref)))
    print("KERNEL_OK")
</pallas_src>

<mosaic_0001>
module attributes {stable_mosaic.version = 11 : i64} {
  func.func @transformer_block_kernel(%arg0: memref<16x32xf32, #tpu.memory_space<vmem>>, %arg1: memref<32x64xbf16, #tpu.memory_space<vmem>>, %arg2: memref<32x32xbf16, #tpu.memory_space<vmem>>, %arg3: memref<32x128xbf16, #tpu.memory_space<vmem>>, %arg4: memref<64x32xbf16, #tpu.memory_space<vmem>>, %arg5: memref<1x32xf32, #tpu.memory_space<vmem>>, %arg6: memref<1x32xf32, #tpu.memory_space<vmem>>, %arg7: memref<8x8xf32, #tpu.memory_space<vmem>>, %arg8: memref<8x8xf32, #tpu.memory_space<vmem>>, %arg9: memref<8x8xf32, #tpu.memory_space<vmem>>, %arg10: memref<16x32xf32, #tpu.memory_space<vmem>>) attributes {dimension_semantics = [], scalar_prefetch = 0 : i64, scratch_operands = 0 : i64, tpu.core_type = #tpu.core_type<tc>} {
    %c0 = arith.constant 0 : index
    %c0_0 = arith.constant 0 : index
    %0 = vector.load %arg0[%c0, %c0_0] : memref<16x32xf32, #tpu.memory_space<vmem>>, vector<16x32xf32>
    %1 = arith.mulf %0, %0 : vector<16x32xf32>
    %cst = arith.constant dense<0.000000e+00> : vector<16xf32>
    %2 = vector.multi_reduction <add>, %1, %cst [1] : vector<16x32xf32> to vector<16xf32>
    %3 = vector.shape_cast %2 : vector<16xf32> to vector<16x1xf32>
    %cst_1 = arith.constant 3.200000e+01 : f32
    %4 = vector.broadcast %cst_1 : f32 to vector<16x1xf32>
    %5 = arith.divf %3, %4 : vector<16x1xf32>
    %cst_2 = arith.constant 9.99999974E-6 : f32
    %6 = vector.broadcast %cst_2 : f32 to vector<16x1xf32>
    %7 = arith.addf %5, %6 : vector<16x1xf32>
    %8 = math.rsqrt %7 : vector<16x1xf32>
    %9 = vector.broadcast %8 : vector<16x1xf32> to vector<16x32xf32>
    %10 = arith.mulf %0, %9 : vector<16x32xf32>
    %c0_3 = arith.constant 0 : index
    %c0_4 = arith.constant 0 : index
    %11 = vector.load %arg5[%c0_3, %c0_4] : memref<1x32xf32, #tpu.memory_space<vmem>>, vector<1x32xf32>
    %12 = vector.broadcast %11 : vector<1x32xf32> to vector<16x32xf32>
    %13 = arith.mulf %10, %12 : vector<16x32xf32>
    %14 = arith.truncf %13 : vector<16x32xf32> to vector<16x32xbf16>
    %c0_5 = arith.constant 0 : index
    %c0_6 = arith.constant 0 : index
    %15 = vector.load %arg1[%c0_5, %c0_6] : memref<32x64xbf16, #tpu.memory_space<vmem>>, vector<32x64xbf16>
    %cst_7 = arith.constant dense<0.000000e+00> : vector<16x64xf32>
    %16 = tpu.matmul %14, %15, %cst_7 {dimension_numbers = #tpu.dot_dimension_numbers<[1], [0], [0], [1], [0, 0, 1, 1], [], []>} : vector<16x32xbf16>, vector<32x64xbf16>, vector<16x64xf32> -> vector<16x64xf32>
    %17 = vector.shape_cast %16 : vector<16x64xf32> to vector<2x8x64xf32>
    %18 = vector.extract_strided_slice %17 {offsets = [0, 0, 0], sizes = [2, 8, 8], strides = [1, 1, 1]} : vector<2x8x64xf32> to vector<2x8x8xf32>
    %19 = vector.extract_strided_slice %17 {offsets = [0, 0, 8], sizes = [2, 8, 8], strides = [1, 1, 1]} : vector<2x8x64xf32> to vector<2x8x8xf32>
    %20 = vector.extract_strided_slice %17 {offsets = [0, 0, 16], sizes = [2, 8, 8], strides = [1, 1, 1]} : vector<2x8x64xf32> to vector<2x8x8xf32>
    %21 = vector.extract_strided_slice %17 {offsets = [0, 0, 24], sizes = [2, 8, 8], strides = [1, 1, 1]} : vector<2x8x64xf32> to vector<2x8x8xf32>
    %22 = tpu.concatenate %18, %19, %20, %21 in 0 : vector<2x8x8xf32>, vector<2x8x8xf32>, vector<2x8x8xf32>, vector<2x8x8xf32> -> vector<8x8x8xf32>
    %23 = vector.extract_strided_slice %17 {offsets = [0, 0, 32], sizes = [2, 8, 8], strides = [1, 1, 1]} : vector<2x8x64xf32> to vector<2x8x8xf32>
    %24 = vector.extract_strided_slice %17 {offsets = [0, 0, 32], sizes = [2, 8, 8], strides = [1, 1, 1]} : vector<2x8x64xf32> to vector<2x8x8xf32>
    %25 = vector.extract_strided_slice %17 {offsets = [0, 0, 40], sizes = [2, 8, 8], strides = [1, 1, 1]} : vector<2x8x64xf32> to vector<2x8x8xf32>
    %26 = vector.extract_strided_slice %17 {offsets = [0, 0, 40], sizes = [2, 8, 8], strides = [1, 1, 1]} : vector<2x8x64xf32> to vector<2x8x8xf32>
    %27 = tpu.concatenate %23, %24, %25, %26 in 0 : vector<2x8x8xf32>, vector<2x8x8xf32>, vector<2x8x8xf32>, vector<2x8x8xf32> -> vector<8x8x8xf32>
    %28 = vector.extract_strided_slice %17 {offsets = [0, 0, 48], sizes = [2, 8, 8], strides = [1, 1, 1]} : vector<2x8x64xf32> to vector<2x8x8xf32>
    %29 = vector.extract_strided_slice %17 {offsets = [0, 0, 48], sizes = [2, 8, 8], strides = [1, 1, 1]} : vector<2x8x64xf32> to vector<2x8x8xf32>
    %30 = vector.extract_strided_slice %17 {offsets = [0, 0, 56], sizes = [2, 8, 8], strides = [1, 1, 1]} : vector<2x8x64xf32> to vector<2x8x8xf32>
    %31 = vector.extract_strided_slice %17 {offsets = [0, 0, 56], sizes = [2, 8, 8], strides = [1, 1, 1]} : vector<2x8x64xf32> to vector<2x8x8xf32>
    %32 = tpu.concatenate %28, %29, %30, %31 in 0 : vector<2x8x8xf32>, vector<2x8x8xf32>, vector<2x8x8xf32>, vector<2x8x8xf32> -> vector<8x8x8xf32>
    %c0_8 = arith.constant 0 : index
    %c0_9 = arith.constant 0 : index
    %33 = vector.load %arg7[%c0_8, %c0_9] : memref<8x8xf32, #tpu.memory_space<vmem>>, vector<8x8xf32>
    %34 = vector.shape_cast %33 : vector<8x8xf32> to vector<1x8x8xf32>
    %c0_10 = arith.constant 0 : index
    %c0_11 = arith.constant 0 : index
    %35 = vector.load %arg8[%c0_10, %c0_11] : memref<8x8xf32, #tpu.memory_space<vmem>>, vector<8x8xf32>
    %36 = vector.shape_cast %35 : vector<8x8xf32> to vector<1x8x8xf32>
    %37 = vector.extract_strided_slice %22 {offsets = [0, 0, 4], sizes = [8, 8, 4], strides = [1, 1, 1]} : vector<8x8x8xf32> to vector<8x8x4xf32>
    %cst_12 = arith.constant 0.000000e+00 : f32
    %38 = vector.broadcast %cst_12 : f32 to vector<8x8x4xf32>
    %39 = arith.subf %38, %37 : vector<8x8x4xf32>
    %40 = vector.extract_strided_slice %22 {offsets = [0, 0, 0], sizes = [8, 8, 4], strides = [1, 1, 1]} : vector<8x8x8xf32> to vector<8x8x4xf32>
    %41 = tpu.concatenate %39, %40 in 2 : vector<8x8x4xf32>, vector<8x8x4xf32> -> vector<8x8x8xf32>
    %42 = vector.broadcast %34 : vector<1x8x8xf32> to vector<8x8x8xf32>
    %43 = arith.mulf %22, %42 : vector<8x8x8xf32>
    %44 = vector.broadcast %36 : vector<1x8x8xf32> to vector<8x8x8xf32>
    %45 = arith.mulf %41, %44 : vector<8x8x8xf32>
    %46 = arith.addf %43, %45 : vector<8x8x8xf32>
    %47 = arith.truncf %46 : vector<8x8x8xf32> to vector<8x8x8xbf16>
    %48 = vector.extract_strided_slice %27 {offsets = [0, 0, 4], sizes = [8, 8, 4], strides = [1, 1, 1]} : vector<8x8x8xf32> to vector<8x8x4xf32>
    %cst_13 = arith.constant 0.000000e+00 : f32
    %49 = vector.broadcast %cst_13 : f32 to vector<8x8x4xf32>
    %50 = arith.subf %49, %48 : vector<8x8x4xf32>
    %51 = vector.extract_strided_slice %27 {offsets = [0, 0, 0], sizes = [8, 8, 4], strides = [1, 1, 1]} : vector<8x8x8xf32> to vector<8x8x4xf32>
    %52 = tpu.concatenate %50, %51 in 2 : vector<8x8x4xf32>, vector<8x8x4xf32> -> vector<8x8x8xf32>
    %53 = vector.broadcast %34 : vector<1x8x8xf32> to vector<8x8x8xf32>
    %54 = arith.mulf %27, %53 : vector<8x8x8xf32>
    %55 = vector.broadcast %36 : vector<1x8x8xf32> to vector<8x8x8xf32>
    %56 = arith.mulf %52, %55 : vector<8x8x8xf32>
    %57 = arith.addf %54, %56 : vector<8x8x8xf32>
    %58 = arith.truncf %57 : vector<8x8x8xf32> to vector<8x8x8xbf16>
    %59 = arith.truncf %32 : vector<8x8x8xf32> to vector<8x8x8xbf16>
    "tpu.trace_start"() <{level = 10 : i32, message = "nqd,nkd->nqk"}> : () -> ()
    %cst_14 = arith.constant dense<0.000000e+00> : vector<8x8x8xf32>
    %60 = tpu.matmul %47, %58, %cst_14 {dimension_numbers = #tpu.dot_dimension_numbers<[2], [2], [1], [1], [0, 0, 0, 1, 1, 1], [0], [0]>} : vector<8x8x8xbf16>, vector<8x8x8xbf16>, vector<8x8x8xf32> -> vector<8x8x8xf32>
    "tpu.trace_stop"() : () -> ()
    %cst_15 = arith.constant 0.353553385 : f32
    %61 = vector.broadcast %cst_15 : f32 to vector<8x8x8xf32>
    %62 = arith.mulf %60, %61 : vector<8x8x8xf32>
    %c0_16 = arith.constant 0 : index
    %c0_17 = arith.constant 0 : index
    %63 = vector.load %arg9[%c0_16, %c0_17] : memref<8x8xf32, #tpu.memory_space<vmem>>, vector<8x8xf32>
    %64 = vector.shape_cast %63 : vector<8x8xf32> to vector<1x8x8xf32>
    %65 = vector.broadcast %64 : vector<1x8x8xf32> to vector<8x8x8xf32>
    %66 = arith.addf %62, %65 : vector<8x8x8xf32>
    %cst_18 = arith.constant dense<0xFF800000> : vector<8x8xf32>
    %67 = vector.multi_reduction <maximumf>, %66, %cst_18 [2] : vector<8x8x8xf32> to vector<8x8xf32>
    %cst_19 = arith.constant 0xFF800000 : f32
    %68 = vector.broadcast %cst_19 : f32 to vector<8x8xf32>
    %69 = arith.maximumf %68, %67 : vector<8x8xf32>
    %70 = vector.shape_cast %69 : vector<8x8xf32> to vector<8x8x1xf32>
    %71 = vector.broadcast %70 : vector<8x8x1xf32> to vector<8x8x8xf32>
    %72 = arith.subf %66, %71 : vector<8x8x8xf32>
    %73 = math.exp %72 : vector<8x8x8xf32>
    %cst_20 = arith.constant dense<0.000000e+00> : vector<8x8xf32>
    %74 = vector.multi_reduction <add>, %73, %cst_20 [2] : vector<8x8x8xf32> to vector<8x8xf32>
    %75 = vector.shape_cast %74 : vector<8x8xf32> to vector<8x8x1xf32>
    %76 = vector.broadcast %75 : vector<8x8x1xf32> to vector<8x8x8xf32>
    %77 = arith.divf %73, %76 : vector<8x8x8xf32>
    %78 = arith.truncf %77 : vector<8x8x8xf32> to vector<8x8x8xbf16>
    "tpu.trace_start"() <{level = 10 : i32, message = "nqk,nkd->nqd"}> : () -> ()
    %cst_21 = arith.constant dense<0.000000e+00> : vector<8x8x8xf32>
    %79 = tpu.matmul %78, %59, %cst_21 {dimension_numbers = #tpu.dot_dimension_numbers<[2], [1], [1], [2], [0, 0, 0, 1, 1, 2], [0], [0]>} : vector<8x8x8xbf16>, vector<8x8x8xbf16>, vector<8x8x8xf32> -> vector<8x8x8xf32>
    "tpu.trace_stop"() : () -> ()
    %80 = vector.extract_strided_slice %79 {offsets = [0, 0, 0], sizes = [2, 8, 8], strides = [1, 1, 1]} : vector<8x8x8xf32> to vector<2x8x8xf32>
    %81 = vector.extract_strided_slice %79 {offsets = [2, 0, 0], sizes = [2, 8, 8], strides = [1, 1, 1]} : vector<8x8x8xf32> to vector<2x8x8xf32>
    %82 = vector.extract_strided_slice %79 {offsets = [4, 0, 0], sizes = [2, 8, 8], strides = [1, 1, 1]} : vector<8x8x8xf32> to vector<2x8x8xf32>
    %83 = vector.extract_strided_slice %79 {offsets = [6, 0, 0], sizes = [2, 8, 8], strides = [1, 1, 1]} : vector<8x8x8xf32> to vector<2x8x8xf32>
    %84 = tpu.concatenate %80, %81, %82, %83 in 2 : vector<2x8x8xf32>, vector<2x8x8xf32>, vector<2x8x8xf32>, vector<2x8x8xf32> -> vector<2x8x32xf32>
    %85 = vector.shape_cast %84 : vector<2x8x32xf32> to vector<16x32xf32>
    %86 = arith.truncf %85 : vector<16x32xf32> to vector<16x32xbf16>
    %c0_22 = arith.constant 0 : index
    %c0_23 = arith.constant 0 : index
    %87 = vector.load %arg2[%c0_22, %c0_23] : memref<32x32xbf16, #tpu.memory_space<vmem>>, vector<32x32xbf16>
    %cst_24 = arith.constant dense<0.000000e+00> : vector<16x32xf32>
    %88 = tpu.matmul %86, %87, %cst_24 {dimension_numbers = #tpu.dot_dimension_numbers<[1], [0], [0], [1], [0, 0, 1, 1], [], []>} : vector<16x32xbf16>, vector<32x32xbf16>, vector<16x32xf32> -> vector<16x32xf32>
    %89 = arith.addf %0, %88 : vector<16x32xf32>
    %90 = arith.mulf %89, %89 : vector<16x32xf32>
    %cst_25 = arith.constant dense<0.000000e+00> : vector<16xf32>
    %91 = vector.multi_reduction <add>, %90, %cst_25 [1] : vector<16x32xf32> to vector<16xf32>
    %92 = vector.shape_cast %91 : vector<16xf32> to vector<16x1xf32>
    %cst_26 = arith.constant 3.200000e+01 : f32
    %93 = vector.broadcast %cst_26 : f32 to vector<16x1xf32>
    %94 = arith.divf %92, %93 : vector<16x1xf32>
    %cst_27 = arith.constant 9.99999974E-6 : f32
    %95 = vector.broadcast %cst_27 : f32 to vector<16x1xf32>
    %96 = arith.addf %94, %95 : vector<16x1xf32>
    %97 = math.rsqrt %96 : vector<16x1xf32>
    %98 = vector.broadcast %97 : vector<16x1xf32> to vector<16x32xf32>
    %99 = arith.mulf %89, %98 : vector<16x32xf32>
    %c0_28 = arith.constant 0 : index
    %c0_29 = arith.constant 0 : index
    %100 = vector.load %arg6[%c0_28, %c0_29] : memref<1x32xf32, #tpu.memory_space<vmem>>, vector<1x32xf32>
    %101 = vector.broadcast %100 : vector<1x32xf32> to vector<16x32xf32>
    %102 = arith.mulf %99, %101 : vector<16x32xf32>
    %103 = arith.truncf %102 : vector<16x32xf32> to vector<16x32xbf16>
    %c0_30 = arith.constant 0 : index
    %c0_31 = arith.constant 0 : index
    %104 = vector.load %arg3[%c0_30, %c0_31] : memref<32x128xbf16, #tpu.memory_space<vmem>>, vector<32x128xbf16>
    %cst_32 = arith.constant dense<0.000000e+00> : vector<16x128xf32>
    %105 = tpu.matmul %103, %104, %cst_32 {dimension_numbers = #tpu.dot_dimension_numbers<[1], [0], [0], [1], [0, 0, 1, 1], [], []>} : vector<16x32xbf16>, vector<32x128xbf16>, vector<16x128xf32> -> vector<16x128xf32>
    %106 = vector.extract_strided_slice %105 {offsets = [0, 0], sizes = [16, 64], strides = [1, 1]} : vector<16x128xf32> to vector<16x64xf32>
    %107 = arith.negf %106 : vector<16x64xf32>
    %108 = math.exp %107 : vector<16x64xf32>
    %cst_33 = arith.constant 1.000000e+00 : f32
    %109 = vector.broadcast %cst_33 : f32 to vector<16x64xf32>
    %110 = arith.addf %109, %108 : vector<16x64xf32>
    %111 = arith.divf %109, %110 : vector<16x64xf32>
    %112 = arith.mulf %106, %111 : vector<16x64xf32>
    %113 = vector.extract_strided_slice %105 {offsets = [0, 64], sizes = [16, 64], strides = [1, 1]} : vector<16x128xf32> to vector<16x64xf32>
    %114 = arith.mulf %112, %113 : vector<16x64xf32>
    %115 = arith.truncf %114 : vector<16x64xf32> to vector<16x64xbf16>
    %c0_34 = arith.constant 0 : index
    %c0_35 = arith.constant 0 : index
    %116 = vector.load %arg4[%c0_34, %c0_35] : memref<64x32xbf16, #tpu.memory_space<vmem>>, vector<64x32xbf16>
    %cst_36 = arith.constant dense<0.000000e+00> : vector<16x32xf32>
    %117 = tpu.matmul %115, %116, %cst_36 {dimension_numbers = #tpu.dot_dimension_numbers<[1], [0], [0], [1], [0, 0, 1, 1], [], []>} : vector<16x64xbf16>, vector<64x32xbf16>, vector<16x32xf32> -> vector<16x32xf32>
    %118 = arith.addf %89, %117 : vector<16x32xf32>
    %c0_37 = arith.constant 0 : index
    %c0_38 = arith.constant 0 : index
    %119 = vector.load %arg10[%c0_37, %c0_38] : memref<16x32xf32, #tpu.memory_space<vmem>>, vector<16x32xf32>
    tpu.vector_store %arg10[%c0_37, %c0_38], %118 {strides = array<i32>} : memref<16x32xf32, #tpu.memory_space<vmem>>, vector<16x32xf32>,
    return
  }
}

</mosaic_0001>

<llo_original>
// kernel: transformer_block.1
$region0: #{transformer_block.1}
  #allocation0 [shape = 'u32[]', space=smem, size = 0x4, offset = 0x4, fixed_abs, tag = 'smem constant byte address 0x4 - core index']
  #allocation1 [shape = 'u32[144,128]{1,0:T(1,128)}', space=vmem, size = 0x12000, scoped, tag = 'internal scratch']
  %s0 = inlined_call_operand.vmem [shape: f32[16,32], index: 0, kind: input, shape index: {}]
  %s1 = inlined_call_operand.vmem [shape: bf16[32,64], index: 1, kind: input, shape index: {}]
  %s2 = inlined_call_operand.vmem [shape: bf16[32,32], index: 2, kind: input, shape index: {}]
  %s3 = inlined_call_operand.vmem [shape: bf16[32,128], index: 3, kind: input, shape index: {}]
  %s4 = inlined_call_operand.vmem [shape: bf16[64,32], index: 4, kind: input, shape index: {}]
  %s5 = inlined_call_operand.vmem [shape: f32[1,32], index: 5, kind: input, shape index: {}]
  %s6 = inlined_call_operand.vmem [shape: f32[1,32], index: 6, kind: input, shape index: {}]
  %s7 = inlined_call_operand.vmem [shape: f32[8,8], index: 7, kind: input, shape index: {}]
  %s8 = inlined_call_operand.vmem [shape: f32[8,8], index: 8, kind: input, shape index: {}]
  %s9 = inlined_call_operand.vmem [shape: f32[8,8], index: 9, kind: input, shape index: {}]
  %s10 = inlined_call_operand.hbm [shape: f32[16,32], index: 10, kind: output, shape index: {}]
  %s11 = sld [smem:[#allocation0]]
  $region50: #{transformer_block.1} parent=0
    _
  %s13 = ssub.s32 1, %s11
  %s14 = scalar_select 0, %s13, %s11
  $region1: #{transformer_block.1} parent=0
    #allocation2 [shape = 'u8[8192]{0}', space=vmem, size = 0x2000, scoped, tag = 'output window, operand 0, single buffered']
    #allocation3 [shape = 's32[1]{0}', space=sflag, size = 0x4, scoped, tag = 'scoped memory for transformer_block.1']
    %15 = vsyncpa [#allocation3], 0
    // Predicated region
    $region2: #{transformer_block.1} parent=1 // pred_check
      _
    $region3: #{transformer_block.1} parent=1 // pred_check_branch
      %17 = sbr.rel (0) target = $region5
    $region4: #{transformer_block.1} parent=1 // pred_region
      _
    $region5: #{transformer_block.1} parent=1 // pred_fallthru
      _
    // Predicated region
    $region6: #{transformer_block.1} parent=1 // pred_check
      _
    $region7: #{transformer_block.1} parent=1 // pred_check_branch
      %19 = sbr.rel (0) target = $region9
    $region8: #{transformer_block.1} parent=1 // pred_region
      _
    $region9: #{transformer_block.1} parent=1 // pred_fallthru
      _
    // Predicated region
    $region10: #{transformer_block.1} parent=1 // pred_check
      _
    $region11: #{transformer_block.1} parent=1 // pred_check_branch
      %21 = sbr.rel (0) target = $region13
    $region12: #{transformer_block.1} parent=1 // pred_region
      _
    $region13: #{transformer_block.1} parent=1 // pred_fallthru
      _
    // Predicated region
    $region14: #{transformer_block.1} parent=1 // pred_check
      _
    $region15: #{transformer_block.1} parent=1 // pred_check_branch
      %23 = sbr.rel (0) target = $region17
    $region16: #{transformer_block.1} parent=1 // pred_region
      _
    $region17: #{transformer_block.1} parent=1 // pred_fallthru
      _
    // Predicated region
    $region18: #{transformer_block.1} parent=1 // pred_check
      _
    $region19: #{transformer_block.1} parent=1 // pred_check_branch
      %25 = sbr.rel (0) target = $region21
    $region20: #{transformer_block.1} parent=1 // pred_region
      _
    $region21: #{transformer_block.1} parent=1 // pred_fallthru
      _
    // Predicated region
    $region22: #{transformer_block.1} parent=1 // pred_check
      _
    $region23: #{transformer_block.1} parent=1 // pred_check_branch
      %27 = sbr.rel (0) target = $region25
    $region24: #{transformer_block.1} parent=1 // pred_region
      _
    $region25: #{transformer_block.1} parent=1 // pred_fallthru
      _
    // Predicated region
    $region26: #{transformer_block.1} parent=1 // pred_check
      _
    $region27: #{transformer_block.1} parent=1 // pred_check_branch
      %29 = sbr.rel (0) target = $region29
    $region28: #{transformer_block.1} parent=1 // pred_region
      _
    $region29: #{transformer_block.1} parent=1 // pred_fallthru
      _
    // Predicated region
    $region30: #{transformer_block.1} parent=1 // pred_check
      _
    $region31: #{transformer_block.1} parent=1 // pred_check_branch
      %31 = sbr.rel (0) target = $region33
    $region32: #{transformer_block.1} parent=1 // pred_region
      _
    $region33: #{transformer_block.1} parent=1 // pred_fallthru
      _
    // Predicated region
    $region34: #{transformer_block.1} parent=1 // pred_check
      _
    $region35: #{transformer_block.1} parent=1 // pred_check_branch
      %33 = sbr.rel (0) target = $region37
    $region36: #{transformer_block.1} parent=1 // pred_region
      _
    $region37: #{transformer_block.1} parent=1 // pred_fallthru
      _
    // Predicated region
    $region38: #{transformer_block.1} parent=1 // pred_check
      _
    $region39: #{transformer_block.1} parent=1 // pred_check_branch
      %35 = sbr.rel (0) target = $region41
    $region40: #{transformer_block.1} parent=1 // pred_region
      _
    $region41: #{transformer_block.1} parent=1 // pred_fallthru
      _
    %v37 = vld [vmem:[%s0] sm:$0xff]
    %v38 = vld [vmem:[%s0 + $0x8] sm:$0xff]
    %v39 = vmul.f32 %v37, %v37
    %v40 = vmul.f32 %v38, %v38
    %vm41 = vcmask 261120
    %v42 = vsel %vm41, %v39, 0.0
    %43 = vadd.xlane.f32.xlu0 %v42
    %v44 = vpop.xlane.xlu0 %43
    %v45 = vsel %vm41, %v40, 0.0
    %46 = vadd.xlane.f32.xlu0 %v45
    %v47 = vpop.xlane.xlu0 %46
    %v48 = vrcp.pop 32.0
    %v49 = vmul.f32 %v44, %v48
    %v50 = vmul.f32 %v47, %v48
    %v51 = vadd.f32 %v49, 1e-05
    %v52 = vadd.f32 %v50, 1e-05
    %v53 = vrsqrt.pop %v51
    %v54 = vrsqrt.pop %v52
    %v55 = vmul.f32 %v37, %v53
    %v56 = vmul.f32 %v38, %v54
    %v57 = vld [vmem:[%s5] sm:$0x1]
    %v59 = vlaneseq
    %v60 = vshrl.u32 %v59, 7
    %v61 = vsub.s32 0, %v60
    %v62 = vrot.slane %v57, %v61
    %v64 = vmul.f32 %v55, %v62
    %v65 = vmul.f32 %v56, %v62
    %v66 = vpack.c.bf16 %v65, %v64
    %v67 = vld [vmem:[%s1] sm:$0xf]
    %v68 = vld [vmem:[%s1 + $0x4] sm:$0xf]
    %v69 = vld [vmem:[%s1 + $0x8] sm:$0xf]
    %v70 = vld [vmem:[%s1 + $0xc] sm:$0xf]
    %v75 = vunpack.c.l.b16 %v67
    %v76 = vunpack.c.l.b16 %v68
    %v77 = vunpack.c.l.b16 %v69
    %v78 = vunpack.c.l.b16 %v70
    %v79 = vpack.c.b16 %v76, %v75
    %v80 = vpack.c.b16 %v78, %v77
    %v84 = vsel %vm41, %v66, 0
    %86 = vmatprep.subr.bf16.mxu0 0
    %87 = vmatpush1.bf16.msra.mxu0 %v79
    %88 = vmatprep.subr.bf16.mxu0 0
    %89 = vmatpush1.bf16.msra.mxu0 %v80
    %90 = vmatprep.subr.bf16.mxu0 0
    %91 = vmatpush1.bf16.msra.mxu0 0
    %92 = vmatprep.subr.bf16.mxu0 0
    %93 = vmatpush1.bf16.msra.mxu0 0
    %94 = vmatprep.subr.bf16.mxu0 0
    %95 = vmatpush1.bf16.msra.mxu0 0
    %96 = vmatprep.subr.bf16.mxu0 0
    %97 = vmatpush1.bf16.msra.mxu0 0
    %98 = vmatprep.subr.bf16.mxu0 0
    %99 = vmatpush1.bf16.msra.mxu0 0
    %100 = vmatprep.subr.bf16.mxu0 0
    %101 = vmatpush1.bf16.msra.mxu0 0
    %102 = vmatprep.subr.bf16.mxu0 0
    %103 = vmatpush1.bf16.msra.mxu0 0
    %104 = vmatprep.subr.bf16.mxu0 0
    %105 = vmatpush1.bf16.msra.mxu0 0
    %106 = vmatprep.subr.bf16.mxu0 0
    %107 = vmatpush1.bf16.msra.mxu0 0
    %108 = vmatprep.subr.bf16.mxu0 0
    %109 = vmatpush1.bf16.msra.mxu0 0
    %110 = vmatprep.subr.bf16.mxu0 0
    %111 = vmatpush1.bf16.msra.mxu0 0
    %112 = vmatprep.subr.bf16.mxu0 0
    %113 = vmatpush1.bf16.msra.mxu0 0
    %114 = vmatprep.subr.bf16.mxu0 0
    %115 = vmatpush1.bf16.msra.mxu0 0
    %116 = vmatprep.subr.bf16.mxu0 0
    %117 = vmatpush1.bf16.msra.mxu0 0
    %118 = vmatprep.mubr.bf16.mxu0 0
    %119 = vmatmul.mubr.bf16.gmra.mrb[0].mxu0 %v84
    %v120 = vpop.f32.mrb[0].mxu0
    %v121 = vadd.f32 0.0, %v120
    %v122 = vpop.f32.mrb[0].mxu0
    %v123 = vpop.f32.mrb[0].mxu0
    %v124 = vadd.f32 0.0, %v123
    %v125 = vpop.f32.mrb[0].mxu0
    %126 = vdwg.mxu0
    %129 = vrot.lane.b32.xlu0 %v121, 120
    %v130 = vpop.permute.xlu0 %129
    %131 = vrot.lane.b32.xlu0 %v124, 120
    %v132 = vpop.permute.xlu0 %131
    %135 = vrot.lane.b32.xlu0 %v121, 112
    %v136 = vpop.permute.xlu0 %135
    %137 = vrot.lane.b32.xlu0 %v124, 112
    %v138 = vpop.permute.xlu0 %137
    %141 = vrot.lane.b32.xlu0 %v121, 104
    %v142 = vpop.permute.xlu0 %141
    %143 = vrot.lane.b32.xlu0 %v124, 104
    %v144 = vpop.permute.xlu0 %143
    %v147 = vld [vmem:[%s7] sm:$0xff]
    %v148 = vld [vmem:[%s8] sm:$0xff]
    %v149 = vsub.f32 0.0, %v121
    %v150 = vsub.f32 0.0, %v124
    %v151 = vsub.f32 0.0, %v130
    %v152 = vsub.f32 0.0, %v132
    %v153 = vsub.f32 0.0, %v136
    %v154 = vsub.f32 0.0, %v138
    %v155 = vsub.f32 0.0, %v142
    %v156 = vsub.f32 0.0, %v144
    %165 = vrot.lane.b32.xlu0 %v149, 124
    %v166 = vpop.permute.xlu0 %165
    %167 = vrot.lane.b32.xlu0 %v150, 124
    %v168 = vpop.permute.xlu0 %167
    %169 = vrot.lane.b32.xlu0 %v151, 124
    %v170 = vpop.permute.xlu0 %169
    %171 = vrot.lane.b32.xlu0 %v152, 124
    %v172 = vpop.permute.xlu0 %171
    %173 = vrot.lane.b32.xlu0 %v153, 124
    %v174 = vpop.permute.xlu0 %173
    %175 = vrot.lane.b32.xlu0 %v154, 124
    %v176 = vpop.permute.xlu0 %175
    %177 = vrot.lane.b32.xlu0 %v155, 124
    %v178 = vpop.permute.xlu0 %177
    %179 = vrot.lane.b32.xlu0 %v156, 124
    %v180 = vpop.permute.xlu0 %179
    %189 = vrot.lane.b32.xlu0 %v121, 4
    %v190 = vpop.permute.xlu0 %189
    %191 = vrot.lane.b32.xlu0 %v124, 4
    %v192 = vpop.permute.xlu0 %191
    %193 = vrot.lane.b32.xlu0 %v130, 4
    %v194 = vpop.permute.xlu0 %193
    %195 = vrot.lane.b32.xlu0 %v132, 4
    %v196 = vpop.permute.xlu0 %195
    %197 = vrot.lane.b32.xlu0 %v136, 4
    %v198 = vpop.permute.xlu0 %197
    %199 = vrot.lane.b32.xlu0 %v138, 4
    %v200 = vpop.permute.xlu0 %199
    %201 = vrot.lane.b32.xlu0 %v142, 4
    %v202 = vpop.permute.xlu0 %201
    %203 = vrot.lane.b32.xlu0 %v144, 4
    %v204 = vpop.permute.xlu0 %203
    %vm213 = vcmask 31744
    %v214 = vsel %vm213, %v166, %v190
    %v215 = vsel %vm213, %v168, %v192
    %v216 = vsel %vm213, %v170, %v194
    %v217 = vsel %vm213, %v172, %v196
    %v218 = vsel %vm213, %v174, %v198
    %v219 = vsel %vm213, %v176, %v200
    %v220 = vsel %vm213, %v178, %v202
    %v221 = vsel %vm213, %v180, %v204
    %v222 = vmul.f32 %v121, %v147
    %v223 = vmul.f32 %v124, %v147
    %v224 = vmul.f32 %v130, %v147
    %v225 = vmul.f32 %v132, %v147
    %v226 = vmul.f32 %v136, %v147
    %v227 = vmul.f32 %v138, %v147
    %v228 = vmul.f32 %v142, %v147
    %v229 = vmul.f32 %v144, %v147
    %v230 = vmul.f32 %v214, %v148
    %v231 = vmul.f32 %v215, %v148
    %v232 = vmul.f32 %v216, %v148
    %v233 = vmul.f32 %v217, %v148
    %v234 = vmul.f32 %v218, %v148
    %v235 = vmul.f32 %v219, %v148
    %v236 = vmul.f32 %v220, %v148
    %v237 = vmul.f32 %v221, %v148
    %v238 = vadd.f32 %v222, %v230
    %v239 = vadd.f32 %v223, %v231
    %v240 = vadd.f32 %v224, %v232
    %v241 = vadd.f32 %v225, %v233
    %v242 = vadd.f32 %v226, %v234
    %v243 = vadd.f32 %v227, %v235
    %v244 = vadd.f32 %v228, %v236
    %v245 = vadd.f32 %v229, %v237
    %v246 = vpack.c.bf16 %v238, %v238
    %v247 = vpack.c.bf16 %v239, %v239
    %v248 = vpack.c.bf16 %v240, %v240
    %v249 = vpack.c.bf16 %v241, %v241
    %v250 = vpack.c.bf16 %v242, %v242
    %v251 = vpack.c.bf16 %v243, %v243
    %v252 = vpack.c.bf16 %v244, %v244
    %v253 = vpack.c.bf16 %v245, %v245
    %254 = vrot.lane.b32.xlu0 %v149, 92
    %v255 = vpop.permute.xlu0 %254
    %256 = vrot.lane.b32.xlu0 %v150, 92
    %v257 = vpop.permute.xlu0 %256
    %258 = vrot.lane.b32.xlu0 %v151, 92
    %v259 = vpop.permute.xlu0 %258
    %260 = vrot.lane.b32.xlu0 %v152, 92
    %v261 = vpop.permute.xlu0 %260
    %266 = vrot.lane.b32.xlu0 %v121, 100
    %v267 = vpop.permute.xlu0 %266
    %268 = vrot.lane.b32.xlu0 %v124, 100
    %v269 = vpop.permute.xlu0 %268
    %270 = vrot.lane.b32.xlu0 %v130, 100
    %v271 = vpop.permute.xlu0 %270
    %272 = vrot.lane.b32.xlu0 %v132, 100
    %v273 = vpop.permute.xlu0 %272
    %v278 = vsel %vm213, %v255, %v267
    %v279 = vsel %vm213, %v257, %v269
    %v280 = vsel %vm213, %v259, %v271
    %v281 = vsel %vm213, %v261, %v273
    %283 = vrot.lane.b32.xlu0 %v147, 32
    %v284 = vpop.permute.xlu0 %283
    %v286 = vmul.f32 %v121, %v284
    %v287 = vmul.f32 %v124, %v284
    %v288 = vmul.f32 %v130, %v284
    %v289 = vmul.f32 %v132, %v284
    %v290 = vmul.f32 %v278, %v148
    %v291 = vmul.f32 %v279, %v148
    %v292 = vmul.f32 %v280, %v148
    %v293 = vmul.f32 %v281, %v148
    %298 = vrot.lane.b32.xlu0 %v290, 32
    %v299 = vpop.permute.xlu0 %298
    %300 = vrot.lane.b32.xlu0 %v291, 32
    %v301 = vpop.permute.xlu0 %300
    %302 = vrot.lane.b32.xlu0 %v292, 32
    %v303 = vpop.permute.xlu0 %302
    %304 = vrot.lane.b32.xlu0 %v293, 32
    %v305 = vpop.permute.xlu0 %304
    %v310 = vadd.f32 %v286, %v299
    %v311 = vadd.f32 %v287, %v301
    %v312 = vadd.f32 %v288, %v303
    %v313 = vadd.f32 %v289, %v305
    %v314 = vpack.c.bf16 %v310, %v310
    %v315 = vpack.c.bf16 %v311, %v311
    %v316 = vpack.c.bf16 %v312, %v312
    %v317 = vpack.c.bf16 %v313, %v313
    %v318 = vpack.c.bf16 %v121, %v121
    %v319 = vpack.c.bf16 %v124, %v124
    %v320 = vpack.c.bf16 %v130, %v130
    %v321 = vpack.c.bf16 %v132, %v132
    %323 = vrot.lane.b32.xlu0 %v314, 96
    %v324 = vpop.permute.xlu0 %323
    %vm325 = vcmask 64512
    %v327 = vsel %vm325, %v246, 0
    %v330 = vsel %vm325, %v324, 0
    %332 = vmatprep.subr.bf16.mxu0 0
    %333 = vmatpush1.bf16.xpose.msra.mxu0 %v330
    %334 = vmatprep.subr.bf16.mxu0 0
    %335 = vmatpush1.bf16.xpose.msra.mxu0 0
    %336 = vmatprep.subr.bf16.mxu0 0
    %337 = vmatpush1.bf16.xpose.msra.mxu0 0
    %338 = vmatprep.subr.bf16.mxu0 0
    %339 = vmatpush1.bf16.xpose.msra.mxu0 0
    %340 = vmatprep.subr.bf16.mxu0 0
    %341 = vmatpush1.bf16.xpose.msra.mxu0 0
    %342 = vmatprep.subr.bf16.mxu0 0
    %343 = vmatpush1.bf16.xpose.msra.mxu0 0
    %344 = vmatprep.subr.bf16.mxu0 0
    %345 = vmatpush1.bf16.xpose.msra.mxu0 0
    %346 = vmatprep.subr.bf16.mxu0 0
    %347 = vmatpush1.bf16.xpose.msra.mxu0 0
    %348 = vmatprep.subr.bf16.mxu0 0
    %349 = vmatpush1.bf16.xpose.msra.mxu0 0
    %350 = vmatprep.subr.bf16.mxu0 0
    %351 = vmatpush1.bf16.xpose.msra.mxu0 0
    %352 = vmatprep.subr.bf16.mxu0 0
    %353 = vmatpush1.bf16.xpose.msra.mxu0 0
    %354 = vmatprep.subr.bf16.mxu0 0
    %355 = vmatpush1.bf16.xpose.msra.mxu0 0
    %356 = vmatprep.subr.bf16.mxu0 0
    %357 = vmatpush1.bf16.xpose.msra.mxu0 0
    %358 = vmatprep.subr.bf16.mxu0 0
    %359 = vmatpush1.bf16.xpose.msra.mxu0 0
    %360 = vmatprep.subr.bf16.mxu0 0
    %361 = vmatpush1.bf16.xpose.msra.mxu0 0
    %362 = vmatprep.subr.bf16.mxu0 0
    %363 = vmatpush1.bf16.xpose.msra.mxu0 0
    %364 = vmatprep.mubr.bf16.mxu0 0
    %365 = vmatmul.mubr.bf16.gmra.mrb[0].mxu0 %v327
    %v366 = vpop.f32.mrb[0].mxu0
    %v367 = vadd.f32 0.0, %v366
    %v368 = vpop.f32.mrb[0].mxu0
    %v369 = vpop.f32.mrb[0].mxu0
    %v370 = vpop.f32.mrb[0].mxu0
    %371 = vdwg.mxu0
    %373 = vrot.lane.b32.xlu0 %v315, 96
    %v374 = vpop.permute.xlu0 %373
    %v376 = vsel %vm325, %v247, 0
    %v379 = vsel %vm325, %v374, 0
    %381 = vmatprep.subr.bf16.mxu0 0
    %382 = vmatpush1.bf16.xpose.msra.mxu0 %v379
    %383 = vmatprep.subr.bf16.mxu0 0
    %384 = vmatpush1.bf16.xpose.msra.mxu0 0
    %385 = vmatprep.subr.bf16.mxu0 0
    %386 = vmatpush1.bf16.xpose.msra.mxu0 0
    %387 = vmatprep.subr.bf16.mxu0 0
    %388 = vmatpush1.bf16.xpose.msra.mxu0 0
    %389 = vmatprep.subr.bf16.mxu0 0
    %390 = vmatpush1.bf16.xpose.msra.mxu0 0
    %391 = vmatprep.subr.bf16.mxu0 0
    %392 = vmatpush1.bf16.xpose.msra.mxu0 0
    %393 = vmatprep.subr.bf16.mxu0 0
    %394 = vmatpush1.bf16.xpose.msra.mxu0 0
    %395 = vmatprep.subr.bf16.mxu0 0
    %396 = vmatpush1.bf16.xpose.msra.mxu0 0
    %397 = vmatprep.subr.bf16.mxu0 0
    %398 = vmatpush1.bf16.xpose.msra.mxu0 0
    %399 = vmatprep.subr.bf16.mxu0 0
    %400 = vmatpush1.bf16.xpose.msra.mxu0 0
    %401 = vmatprep.subr.bf16.mxu0 0
    %402 = vmatpush1.bf16.xpose.msra.mxu0 0
    %403 = vmatprep.subr.bf16.mxu0 0
    %404 = vmatpush1.bf16.xpose.msra.mxu0 0
    %405 = vmatprep.subr.bf16.mxu0 0
    %406 = vmatpush1.bf16.xpose.msra.mxu0 0
    %407 = vmatprep.subr.bf16.mxu0 0
    %408 = vmatpush1.bf16.xpose.msra.mxu0 0
    %409 = vmatprep.subr.bf16.mxu0 0
    %410 = vmatpush1.bf16.xpose.msra.mxu0 0
    %411 = vmatprep.subr.bf16.mxu0 0
    %412 = vmatpush1.bf16.xpose.msra.mxu0 0
    %413 = vmatprep.mubr.bf16.mxu0 0
    %414 = vmatmul.mubr.bf16.gmra.mrb[0].mxu0 %v376
    %v415 = vpop.f32.mrb[0].mxu0
    %v416 = vadd.f32 0.0, %v415
    %v417 = vpop.f32.mrb[0].mxu0
    %v418 = vpop.f32.mrb[0].mxu0
    %v419 = vpop.f32.mrb[0].mxu0
    %420 = vdwg.mxu0
    %v422 = vsel %vm325, %v248, 0
    %424 = vmatprep.subr.bf16.mxu0 0
    %425 = vmatpush1.bf16.xpose.msra.mxu0 %v330
    %426 = vmatprep.subr.bf16.mxu0 0
    %427 = vmatpush1.bf16.xpose.msra.mxu0 0
    %428 = vmatprep.subr.bf16.mxu0 0
    %429 = vmatpush1.bf16.xpose.msra.mxu0 0
    %430 = vmatprep.subr.bf16.mxu0 0
    %431 = vmatpush1.bf16.xpose.msra.mxu0 0
    %432 = vmatprep.subr.bf16.mxu0 0
    %433 = vmatpush1.bf16.xpose.msra.mxu0 0
    %434 = vmatprep.subr.bf16.mxu0 0
    %435 = vmatpush1.bf16.xpose.msra.mxu0 0
    %436 = vmatprep.subr.bf16.mxu0 0
    %437 = vmatpush1.bf16.xpose.msra.mxu0 0
    %438 = vmatprep.subr.bf16.mxu0 0
    %439 = vmatpush1.bf16.xpose.msra.mxu0 0
    %440 = vmatprep.subr.bf16.mxu0 0
    %441 = vmatpush1.bf16.xpose.msra.mxu0 0
    %442 = vmatprep.subr.bf16.mxu0 0
    %443 = vmatpush1.bf16.xpose.msra.mxu0 0
    %444 = vmatprep.subr.bf16.mxu0 0
    %445 = vmatpush1.bf16.xpose.msra.mxu0 0
    %446 = vmatprep.subr.bf16.mxu0 0
    %447 = vmatpush1.bf16.xpose.msra.mxu0 0
    %448 = vmatprep.subr.bf16.mxu0 0
    %449 = vmatpush1.bf16.xpose.msra.mxu0 0
    %450 = vmatprep.subr.bf16.mxu0 0
    %451 = vmatpush1.bf16.xpose.msra.mxu0 0
    %452 = vmatprep.subr.bf16.mxu0 0
    %453 = vmatpush1.bf16.xpose.msra.mxu0 0
    %454 = vmatprep.subr.bf16.mxu0 0
    %455 = vmatpush1.bf16.xpose.msra.mxu0 0
    %456 = vmatprep.mubr.bf16.mxu0 0
    %457 = vmatmul.mubr.bf16.gmra.mrb[0].mxu0 %v422
    %v458 = vpop.f32.mrb[0].mxu0
    %v459 = vadd.f32 0.0, %v458
    %v460 = vpop.f32.mrb[0].mxu0
    %v461 = vpop.f32.mrb[0].mxu0
    %v462 = vpop.f32.mrb[0].mxu0
    %463 = vdwg.mxu0
    %v465 = vsel %vm325, %v249, 0
    %467 = vmatprep.subr.bf16.mxu0 0
    %468 = vmatpush1.bf16.xpose.msra.mxu0 %v379
    %469 = vmatprep.subr.bf16.mxu0 0
    %470 = vmatpush1.bf16.xpose.msra.mxu0 0
    %471 = vmatprep.subr.bf16.mxu0 0
    %472 = vmatpush1.bf16.xpose.msra.mxu0 0
    %473 = vmatprep.subr.bf16.mxu0 0
    %474 = vmatpush1.bf16.xpose.msra.mxu0 0
    %475 = vmatprep.subr.bf16.mxu0 0
    %476 = vmatpush1.bf16.xpose.msra.mxu0 0
    %477 = vmatprep.subr.bf16.mxu0 0
    %478 = vmatpush1.bf16.xpose.msra.mxu0 0
    %479 = vmatprep.subr.bf16.mxu0 0
    %480 = vmatpush1.bf16.xpose.msra.mxu0 0
    %481 = vmatprep.subr.bf16.mxu0 0
    %482 = vmatpush1.bf16.xpose.msra.mxu0 0
    %483 = vmatprep.subr.bf16.mxu0 0
    %484 = vmatpush1.bf16.xpose.msra.mxu0 0
    %485 = vmatprep.subr.bf16.mxu0 0
    %486 = vmatpush1.bf16.xpose.msra.mxu0 0
    %487 = vmatprep.subr.bf16.mxu0 0
    %488 = vmatpush1.bf16.xpose.msra.mxu0 0
    %489 = vmatprep.subr.bf16.mxu0 0
    %490 = vmatpush1.bf16.xpose.msra.mxu0 0
    %491 = vmatprep.subr.bf16.mxu0 0
    %492 = vmatpush1.bf16.xpose.msra.mxu0 0
    %493 = vmatprep.subr.bf16.mxu0 0
    %494 = vmatpush1.bf16.xpose.msra.mxu0 0
    %495 = vmatprep.subr.bf16.mxu0 0
    %496 = vmatpush1.bf16.xpose.msra.mxu0 0
    %497 = vmatprep.subr.bf16.mxu0 0
    %498 = vmatpush1.bf16.xpose.msra.mxu0 0
    %499 = vmatprep.mubr.bf16.mxu0 0
    %500 = vmatmul.mubr.bf16.gmra.mrb[0].mxu0 %v465
    %v501 = vpop.f32.mrb[0].mxu0
    %v502 = vadd.f32 0.0, %v501
    %v503 = vpop.f32.mrb[0].mxu0
    %v504 = vpop.f32.mrb[0].mxu0
    %v505 = vpop.f32.mrb[0].mxu0
    %506 = vdwg.mxu0
    %508 = vrot.lane.b32.xlu0 %v316, 96
    %v509 = vpop.permute.xlu0 %508
    %v511 = vsel %vm325, %v250, 0
    %v514 = vsel %vm325, %v509, 0
    %516 = vmatprep.subr.bf16.mxu0 0
    %517 = vmatpush1.bf16.xpose.msra.mxu0 %v514
    %518 = vmatprep.subr.bf16.mxu0 0
    %519 = vmatpush1.bf16.xpose.msra.mxu0 0
    %520 = vmatprep.subr.bf16.mxu0 0
    %521 = vmatpush1.bf16.xpose.msra.mxu0 0
    %522 = vmatprep.subr.bf16.mxu0 0
    %523 = vmatpush1.bf16.xpose.msra.mxu0 0
    %524 = vmatprep.subr.bf16.mxu0 0
    %525 = vmatpush1.bf16.xpose.msra.mxu0 0
    %526 = vmatprep.subr.bf16.mxu0 0
    %527 = vmatpush1.bf16.xpose.msra.mxu0 0
    %528 = vmatprep.subr.bf16.mxu0 0
    %529 = vmatpush1.bf16.xpose.msra.mxu0 0
    %530 = vmatprep.subr.bf16.mxu0 0
    %531 = vmatpush1.bf16.xpose.msra.mxu0 0
    %532 = vmatprep.subr.bf16.mxu0 0
    %533 = vmatpush1.bf16.xpose.msra.mxu0 0
    %534 = vmatprep.subr.bf16.mxu0 0
    %535 = vmatpush1.bf16.xpose.msra.mxu0 0
    %536 = vmatprep.subr.bf16.mxu0 0
    %537 = vmatpush1.bf16.xpose.msra.mxu0 0
    %538 = vmatprep.subr.bf16.mxu0 0
    %539 = vmatpush1.bf16.xpose.msra.mxu0 0
    %540 = vmatprep.subr.bf16.mxu0 0
    %541 = vmatpush1.bf16.xpose.msra.mxu0 0
    %542 = vmatprep.subr.bf16.mxu0 0
    %543 = vmatpush1.bf16.xpose.msra.mxu0 0
    %544 = vmatprep.subr.bf16.mxu0 0
    %545 = vmatpush1.bf16.xpose.msra.mxu0 0
    %546 = vmatprep.subr.bf16.mxu0 0
    %547 = vmatpush1.bf16.xpose.msra.mxu0 0
    %548 = vmatprep.mubr.bf16.mxu0 0
    %549 = vmatmul.mubr.bf16.gmra.mrb[0].mxu0 %v511
    %v550 = vpop.f32.mrb[0].mxu0
    %v551 = vadd.f32 0.0, %v550
    %v552 = vpop.f32.mrb[0].mxu0
    %v553 = vpop.f32.mrb[0].mxu0
    %v554 = vpop.f32.mrb[0].mxu0
    %555 = vdwg.mxu0
    %557 = vrot.lane.b32.xlu0 %v317, 96
    %v558 = vpop.permute.xlu0 %557
    %v560 = vsel %vm325, %v251, 0
    %v563 = vsel %vm325, %v558, 0
    %565 = vmatprep.subr.bf16.mxu0 0
    %566 = vmatpush1.bf16.xpose.msra.mxu0 %v563
    %567 = vmatprep.subr.bf16.mxu0 0
    %568 = vmatpush1.bf16.xpose.msra.mxu0 0
    %569 = vmatprep.subr.bf16.mxu0 0
    %570 = vmatpush1.bf16.xpose.msra.mxu0 0
    %571 = vmatprep.subr.bf16.mxu0 0
    %572 = vmatpush1.bf16.xpose.msra.mxu0 0
    %573 = vmatprep.subr.bf16.mxu0 0
    %574 = vmatpush1.bf16.xpose.msra.mxu0 0
    %575 = vmatprep.subr.bf16.mxu0 0
    %576 = vmatpush1.bf16.xpose.msra.mxu0 0
    %577 = vmatprep.subr.bf16.mxu0 0
    %578 = vmatpush1.bf16.xpose.msra.mxu0 0
    %579 = vmatprep.subr.bf16.mxu0 0
    %580 = vmatpush1.bf16.xpose.msra.mxu0 0
    %581 = vmatprep.subr.bf16.mxu0 0
    %582 = vmatpush1.bf16.xpose.msra.mxu0 0
    %583 = vmatprep.subr.bf16.mxu0 0
    %584 = vmatpush1.bf16.xpose.msra.mxu0 0
    %585 = vmatprep.subr.bf16.mxu0 0
    %586 = vmatpush1.bf16.xpose.msra.mxu0 0
    %587 = vmatprep.subr.bf16.mxu0 0
    %588 = vmatpush1.bf16.xpose.msra.mxu0 0
    %589 = vmatprep.subr.bf16.mxu0 0
    %590 = vmatpush1.bf16.xpose.msra.mxu0 0
    %591 = vmatprep.subr.bf16.mxu0 0
    %592 = vmatpush1.bf16.xpose.msra.mxu0 0
    %593 = vmatprep.subr.bf16.mxu0 0
    %594 = vmatpush1.bf16.xpose.msra.mxu0 0
    %595 = vmatprep.subr.bf16.mxu0 0
    %596 = vmatpush1.bf16.xpose.msra.mxu0 0
    %597 = vmatprep.mubr.bf16.mxu0 0
    %598 = vmatmul.mubr.bf16.gmra.mrb[0].mxu0 %v560
    %v599 = vpop.f32.mrb[0].mxu0
    %v600 = vadd.f32 0.0, %v599
    %v601 = vpop.f32.mrb[0].mxu0
    %v602 = vpop.f32.mrb[0].mxu0
    %v603 = vpop.f32.mrb[0].mxu0
    %604 = vdwg.mxu0
    %v606 = vsel %vm325, %v252, 0
    %608 = vmatprep.subr.bf16.mxu0 0
    %609 = vmatpush1.bf16.xpose.msra.mxu0 %v514
    %610 = vmatprep.subr.bf16.mxu0 0
    %611 = vmatpush1.bf16.xpose.msra.mxu0 0
    %612 = vmatprep.subr.bf16.mxu0 0
    %613 = vmatpush1.bf16.xpose.msra.mxu0 0
    %614 = vmatprep.subr.bf16.mxu0 0
    %615 = vmatpush1.bf16.xpose.msra.mxu0 0
    %616 = vmatprep.subr.bf16.mxu0 0
    %617 = vmatpush1.bf16.xpose.msra.mxu0 0
    %618 = vmatprep.subr.bf16.mxu0 0
    %619 = vmatpush1.bf16.xpose.msra.mxu0 0
    %620 = vmatprep.subr.bf16.mxu0 0
    %621 = vmatpush1.bf16.xpose.msra.mxu0 0
    %622 = vmatprep.subr.bf16.mxu0 0
    %623 = vmatpush1.bf16.xpose.msra.mxu0 0
    %624 = vmatprep.subr.bf16.mxu0 0
    %625 = vmatpush1.bf16.xpose.msra.mxu0 0
    %626 = vmatprep.subr.bf16.mxu0 0
    %627 = vmatpush1.bf16.xpose.msra.mxu0 0
    %628 = vmatprep.subr.bf16.mxu0 0
    %629 = vmatpush1.bf16.xpose.msra.mxu0 0
    %630 = vmatprep.subr.bf16.mxu0 0
    %631 = vmatpush1.bf16.xpose.msra.mxu0 0
    %632 = vmatprep.subr.bf16.mxu0 0
    %633 = vmatpush1.bf16.xpose.msra.mxu0 0
    %634 = vmatprep.subr.bf16.mxu0 0
    %635 = vmatpush1.bf16.xpose.msra.mxu0 0
    %636 = vmatprep.subr.bf16.mxu0 0
    %637 = vmatpush1.bf16.xpose.msra.mxu0 0
    %638 = vmatprep.subr.bf16.mxu0 0
    %639 = vmatpush1.bf16.xpose.msra.mxu0 0
    %640 = vmatprep.mubr.bf16.mxu0 0
    %641 = vmatmul.mubr.bf16.gmra.mrb[0].mxu0 %v606
    %v642 = vpop.f32.mrb[0].mxu0
    %v643 = vadd.f32 0.0, %v642
    %v644 = vpop.f32.mrb[0].mxu0
    %v645 = vpop.f32.mrb[0].mxu0
    %v646 = vpop.f32.mrb[0].mxu0
    %647 = vdwg.mxu0
    %v649 = vsel %vm325, %v253, 0
    %651 = vmatprep.subr.bf16.mxu0 0
    %652 = vmatpush1.bf16.xpose.msra.mxu0 %v563
    %653 = vmatprep.subr.bf16.mxu0 0
    %654 = vmatpush1.bf16.xpose.msra.mxu0 0
    %655 = vmatprep.subr.bf16.mxu0 0
    %656 = vmatpush1.bf16.xpose.msra.mxu0 0
    %657 = vmatprep.subr.bf16.mxu0 0
    %658 = vmatpush1.bf16.xpose.msra.mxu0 0
    %659 = vmatprep.subr.bf16.mxu0 0
    %660 = vmatpush1.bf16.xpose.msra.mxu0 0
    %661 = vmatprep.subr.bf16.mxu0 0
    %662 = vmatpush1.bf16.xpose.msra.mxu0 0
    %663 = vmatprep.subr.bf16.mxu0 0
    %664 = vmatpush1.bf16.xpose.msra.mxu0 0
    %665 = vmatprep.subr.bf16.mxu0 0
    %666 = vmatpush1.bf16.xpose.msra.mxu0 0
    %667 = vmatprep.subr.bf16.mxu0 0
    %668 = vmatpush1.bf16.xpose.msra.mxu0 0
    %669 = vmatprep.subr.bf16.mxu0 0
    %670 = vmatpush1.bf16.xpose.msra.mxu0 0
    %671 = vmatprep.subr.bf16.mxu0 0
    %672 = vmatpush1.bf16.xpose.msra.mxu0 0
    %673 = vmatprep.subr.bf16.mxu0 0
    %674 = vmatpush1.bf16.xpose.msra.mxu0 0
    %675 = vmatprep.subr.bf16.mxu0 0
    %676 = vmatpush1.bf16.xpose.msra.mxu0 0
    %677 = vmatprep.subr.bf16.mxu0 0
    %678 = vmatpush1.bf16.xpose.msra.mxu0 0
    %679 = vmatprep.subr.bf16.mxu0 0
    %680 = vmatpush1.bf16.xpose.msra.mxu0 0
    %681 = vmatprep.subr.bf16.mxu0 0
    %682 = vmatpush1.bf16.xpose.msra.mxu0 0
    %683 = vmatprep.mubr.bf16.mxu0 0
    %684 = vmatmul.mubr.bf16.gmra.mrb[0].mxu0 %v649
    %v685 = vpop.f32.mrb[0].mxu0
    %v686 = vadd.f32 0.0, %v685
    %v687 = vpop.f32.mrb[0].mxu0
    %v688 = vpop.f32.mrb[0].mxu0
    %v689 = vpop.f32.mrb[0].mxu0
    %690 = vdwg.mxu0
    %v691 = vmul.f32 %v367, 0.35355338
    %v692 = vmul.f32 %v416, 0.35355338
    %v693 = vmul.f32 %v459, 0.35355338
    %v694 = vmul.f32 %v502, 0.35355338
    %v695 = vmul.f32 %v551, 0.35355338
    %v696 = vmul.f32 %v600, 0.35355338
    %v697 = vmul.f32 %v643, 0.35355338
    %v698 = vmul.f32 %v686, 0.35355338
    %v699 = vld [vmem:[%s9] sm:$0xff]
    %v700 = vadd.f32 %v691, %v699
    %v701 = vadd.f32 %v692, %v699
    %v702 = vadd.f32 %v693, %v699
    %v703 = vadd.f32 %v694, %v699
    %v704 = vadd.f32 %v695, %v699
    %v705 = vadd.f32 %v696, %v699
    %v706 = vadd.f32 %v697, %v699
    %v707 = vadd.f32 %v698, %v699
    %v708 = vsel %vm325, %v700, -inf
    %709 = vmax.xlane.f32.xlu0 %v708
    %v710 = vpop.xlane.xlu0 %709
    %v711 = vsel %vm325, %v701, -inf
    %712 = vmax.xlane.f32.xlu0 %v711
    %v713 = vpop.xlane.xlu0 %712
    %v714 = vsel %vm325, %v702, -inf
    %715 = vmax.xlane.f32.xlu0 %v714
    %v716 = vpop.xlane.xlu0 %715
    %v717 = vsel %vm325, %v703, -inf
    %718 = vmax.xlane.f32.xlu0 %v717
    %v719 = vpop.xlane.xlu0 %718
    %v720 = vsel %vm325, %v704, -inf
    %721 = vmax.xlane.f32.xlu0 %v720
    %v722 = vpop.xlane.xlu0 %721
    %v723 = vsel %vm325, %v705, -inf
    %724 = vmax.xlane.f32.xlu0 %v723
    %v725 = vpop.xlane.xlu0 %724
    %v726 = vsel %vm325, %v706, -inf
    %727 = vmax.xlane.f32.xlu0 %v726
    %v728 = vpop.xlane.xlu0 %727
    %v729 = vsel %vm325, %v707, -inf
    %730 = vmax.xlane.f32.xlu0 %v729
    %v731 = vpop.xlane.xlu0 %730
    %v732 = vsub.f32 %v700, %v710
    %v733 = vsub.f32 %v701, %v713
    %v734 = vsub.f32 %v702, %v716
    %v735 = vsub.f32 %v703, %v719
    %v736 = vsub.f32 %v704, %v722
    %v737 = vsub.f32 %v705, %v725
    %v738 = vsub.f32 %v706, %v728
    %v739 = vsub.f32 %v707, %v731
    %v740 = vmul.f32 %v732, 1.442695
    %v741 = vpow.pop %v740
    %v742 = vmul.f32 %v733, 1.442695
    %v743 = vpow.pop %v742
    %v744 = vmul.f32 %v734, 1.442695
    %v745 = vpow.pop %v744
    %v746 = vmul.f32 %v735, 1.442695
    %v747 = vpow.pop %v746
    %v748 = vmul.f32 %v736, 1.442695
    %v749 = vpow.pop %v748
    %v750 = vmul.f32 %v737, 1.442695
    %v751 = vpow.pop %v750
    %v752 = vmul.f32 %v738, 1.442695
    %v753 = vpow.pop %v752
    %v754 = vmul.f32 %v739, 1.442695
    %v755 = vpow.pop %v754
    %v756 = vsel %vm325, %v741, 0.0
    %757 = vadd.xlane.f32.xlu0 %v756
    %v758 = vpop.xlane.xlu0 %757
    %v759 = vsel %vm325, %v743, 0.0
    %760 = vadd.xlane.f32.xlu0 %v759
    %v761 = vpop.xlane.xlu0 %760
    %v762 = vsel %vm325, %v745, 0.0
    %763 = vadd.xlane.f32.xlu0 %v762
    %v764 = vpop.xlane.xlu0 %763
    %v765 = vsel %vm325, %v747, 0.0
    %766 = vadd.xlane.f32.xlu0 %v765
    %v767 = vpop.xlane.xlu0 %766
    %v768 = vsel %vm325, %v749, 0.0
    %769 = vadd.xlane.f32.xlu0 %v768
    %v770 = vpop.xlane.xlu0 %769
    %v771 = vsel %vm325, %v751, 0.0
    %772 = vadd.xlane.f32.xlu0 %v771
    %v773 = vpop.xlane.xlu0 %772
    %v774 = vsel %vm325, %v753, 0.0
    %775 = vadd.xlane.f32.xlu0 %v774
    %v776 = vpop.xlane.xlu0 %775
    %v777 = vsel %vm325, %v755, 0.0
    %778 = vadd.xlane.f32.xlu0 %v777
    %v779 = vpop.xlane.xlu0 %778
    %v780 = vrcp.pop %v758
    %v781 = vmul.f32 %v741, %v780
    %v782 = vrcp.pop %v761
    %v783 = vmul.f32 %v743, %v782
    %v784 = vrcp.pop %v764
    %v785 = vmul.f32 %v745, %v784
    %v786 = vrcp.pop %v767
    %v787 = vmul.f32 %v747, %v786
    %v788 = vrcp.pop %v770
    %v789 = vmul.f32 %v749, %v788
    %v790 = vrcp.pop %v773
    %v791 = vmul.f32 %v751, %v790
    %v792 = vrcp.pop %v776
    %v793 = vmul.f32 %v753, %v792
    %v794 = vrcp.pop %v779
    %v795 = vmul.f32 %v755, %v794
    %v796 = vpack.c.bf16 %v781, %v781
    %v797 = vpack.c.bf16 %v783, %v783
    %v798 = vpack.c.bf16 %v785, %v785
    %v799 = vpack.c.bf16 %v787, %v787
    %v800 = vpack.c.bf16 %v789, %v789
    %v801 = vpack.c.bf16 %v791, %v791
    %v802 = vpack.c.bf16 %v793, %v793
    %v803 = vpack.c.bf16 %v795, %v795
    %805 = vrot.lane.b32.xlu0 %v318, 80
    %v806 = vpop.permute.xlu0 %805
    %v808 = vsel %vm325, %v796, 0
    %vm810 = vcmask 1043456
    %v812 = vsel %vm810, %v806, 0
    %814 = vmatprep.subr.bf16.mxu0 0
    %815 = vmatpush1.bf16.msra.mxu0 %v812
    %816 = vmatprep.subr.bf16.mxu0 0
    %817 = vmatpush1.bf16.msra.mxu0 0
    %818 = vmatprep.subr.bf16.mxu0 0
    %819 = vmatpush1.bf16.msra.mxu0 0
    %820 = vmatprep.subr.bf16.mxu0 0
    %821 = vmatpush1.bf16.msra.mxu0 0
    %822 = vmatprep.subr.bf16.mxu0 0
    %823 = vmatpush1.bf16.msra.mxu0 0
    %824 = vmatprep.subr.bf16.mxu0 0
    %825 = vmatpush1.bf16.msra.mxu0 0
    %826 = vmatprep.subr.bf16.mxu0 0
    %827 = vmatpush1.bf16.msra.mxu0 0
    %828 = vmatprep.subr.bf16.mxu0 0
    %829 = vmatpush1.bf16.msra.mxu0 0
    %830 = vmatprep.subr.bf16.mxu0 0
    %831 = vmatpush1.bf16.msra.mxu0 0
    %832 = vmatprep.subr.bf16.mxu0 0
    %833 = vmatpush1.bf16.msra.mxu0 0
    %834 = vmatprep.subr.bf16.mxu0 0
    %835 = vmatpush1.bf16.msra.mxu0 0
    %836 = vmatprep.subr.bf16.mxu0 0
    %837 = vmatpush1.bf16.msra.mxu0 0
    %838 = vmatprep.subr.bf16.mxu0 0
    %839 = vmatpush1.bf16.msra.mxu0 0
    %840 = vmatprep.subr.bf16.mxu0 0
    %841 = vmatpush1.bf16.msra.mxu0 0
    %842 = vmatprep.subr.bf16.mxu0 0
    %843 = vmatpush1.bf16.msra.mxu0 0
    %844 = vmatprep.subr.bf16.mxu0 0
    %845 = vmatpush1.bf16.msra.mxu0 0
    %846 = vmatprep.mubr.bf16.mxu0 0
    %847 = vmatmul.mubr.bf16.gmra.mrb[0].mxu0 %v808
    %v848 = vpop.f32.mrb[0].mxu0
    %v849 = vadd.f32 0.0, %v848
    %v850 = vpop.f32.mrb[0].mxu0
    %v851 = vpop.f32.mrb[0].mxu0
    %v852 = vpop.f32.mrb[0].mxu0
    %853 = vdwg.mxu0
    %855 = vrot.lane.b32.xlu0 %v319, 80
    %v856 = vpop.permute.xlu0 %855
    %v858 = vsel %vm325, %v797, 0
    %v861 = vsel %vm810, %v856, 0
    %863 = vmatprep.subr.bf16.mxu0 0
    %864 = vmatpush1.bf16.msra.mxu0 %v861
    %865 = vmatprep.subr.bf16.mxu0 0
    %866 = vmatpush1.bf16.msra.mxu0 0
    %867 = vmatprep.subr.bf16.mxu0 0
    %868 = vmatpush1.bf16.msra.mxu0 0
    %869 = vmatprep.subr.bf16.mxu0 0
    %870 = vmatpush1.bf16.msra.mxu0 0
    %871 = vmatprep.subr.bf16.mxu0 0
    %872 = vmatpush1.bf16.msra.mxu0 0
    %873 = vmatprep.subr.bf16.mxu0 0
    %874 = vmatpush1.bf16.msra.mxu0 0
    %875 = vmatprep.subr.bf16.mxu0 0
    %876 = vmatpush1.bf16.msra.mxu0 0
    %877 = vmatprep.subr.bf16.mxu0 0
    %878 = vmatpush1.bf16.msra.mxu0 0
    %879 = vmatprep.subr.bf16.mxu0 0
    %880 = vmatpush1.bf16.msra.mxu0 0
    %881 = vmatprep.subr.bf16.mxu0 0
    %882 = vmatpush1.bf16.msra.mxu0 0
    %883 = vmatprep.subr.bf16.mxu0 0
    %884 = vmatpush1.bf16.msra.mxu0 0
    %885 = vmatprep.subr.bf16.mxu0 0
    %886 = vmatpush1.bf16.msra.mxu0 0
    %887 = vmatprep.subr.bf16.mxu0 0
    %888 = vmatpush1.bf16.msra.mxu0 0
    %889 = vmatprep.subr.bf16.mxu0 0
    %890 = vmatpush1.bf16.msra.mxu0 0
    %891 = vmatprep.subr.bf16.mxu0 0
    %892 = vmatpush1.bf16.msra.mxu0 0
    %893 = vmatprep.subr.bf16.mxu0 0
    %894 = vmatpush1.bf16.msra.mxu0 0
    %895 = vmatprep.mubr.bf16.mxu0 0
    %896 = vmatmul.mubr.bf16.gmra.mrb[0].mxu0 %v858
    %v897 = vpop.f32.mrb[0].mxu0
    %v898 = vadd.f32 0.0, %v897
    %v899 = vpop.f32.mrb[0].mxu0
    %v900 = vpop.f32.mrb[0].mxu0
    %v901 = vpop.f32.mrb[0].mxu0
    %902 = vdwg.mxu0
    %v904 = vsel %vm325, %v798, 0
    %906 = vmatprep.subr.bf16.mxu0 0
    %907 = vmatpush1.bf16.msra.mxu0 %v812
    %908 = vmatprep.subr.bf16.mxu0 0
    %909 = vmatpush1.bf16.msra.mxu0 0
    %910 = vmatprep.subr.bf16.mxu0 0
    %911 = vmatpush1.bf16.msra.mxu0 0
    %912 = vmatprep.subr.bf16.mxu0 0
    %913 = vmatpush1.bf16.msra.mxu0 0
    %914 = vmatprep.subr.bf16.mxu0 0
    %915 = vmatpush1.bf16.msra.mxu0 0
    %916 = vmatprep.subr.bf16.mxu0 0
    %917 = vmatpush1.bf16.msra.mxu0 0
    %918 = vmatprep.subr.bf16.mxu0 0
    %919 = vmatpush1.bf16.msra.mxu0 0
    %920 = vmatprep.subr.bf16.mxu0 0
    %921 = vmatpush1.bf16.msra.mxu0 0
    %922 = vmatprep.subr.bf16.mxu0 0
    %923 = vmatpush1.bf16.msra.mxu0 0
    %924 = vmatprep.subr.bf16.mxu0 0
    %925 = vmatpush1.bf16.msra.mxu0 0
    %926 = vmatprep.subr.bf16.mxu0 0
    %927 = vmatpush1.bf16.msra.mxu0 0
    %928 = vmatprep.subr.bf16.mxu0 0
    %929 = vmatpush1.bf16.msra.mxu0 0
    %930 = vmatprep.subr.bf16.mxu0 0
    %931 = vmatpush1.bf16.msra.mxu0 0
    %932 = vmatprep.subr.bf16.mxu0 0
    %933 = vmatpush1.bf16.msra.mxu0 0
    %934 = vmatprep.subr.bf16.mxu0 0
    %935 = vmatpush1.bf16.msra.mxu0 0
    %936 = vmatprep.subr.bf16.mxu0 0
    %937 = vmatpush1.bf16.msra.mxu0 0
    %938 = vmatprep.mubr.bf16.mxu0 0
    %939 = vmatmul.mubr.bf16.gmra.mrb[0].mxu0 %v904
    %v940 = vpop.f32.mrb[0].mxu0
    %v941 = vadd.f32 0.0, %v940
    %v942 = vpop.f32.mrb[0].mxu0
    %v943 = vpop.f32.mrb[0].mxu0
    %v944 = vpop.f32.mrb[0].mxu0
    %945 = vdwg.mxu0
    %v947 = vsel %vm325, %v799, 0
    %949 = vmatprep.subr.bf16.mxu0 0
    %950 = vmatpush1.bf16.msra.mxu0 %v861
    %951 = vmatprep.subr.bf16.mxu0 0
    %952 = vmatpush1.bf16.msra.mxu0 0
    %953 = vmatprep.subr.bf16.mxu0 0
    %954 = vmatpush1.bf16.msra.mxu0 0
    %955 = vmatprep.subr.bf16.mxu0 0
    %956 = vmatpush1.bf16.msra.mxu0 0
    %957 = vmatprep.subr.bf16.mxu0 0
    %958 = vmatpush1.bf16.msra.mxu0 0
    %959 = vmatprep.subr.bf16.mxu0 0
    %960 = vmatpush1.bf16.msra.mxu0 0
    %961 = vmatprep.subr.bf16.mxu0 0
    %962 = vmatpush1.bf16.msra.mxu0 0
    %963 = vmatprep.subr.bf16.mxu0 0
    %964 = vmatpush1.bf16.msra.mxu0 0
    %965 = vmatprep.subr.bf16.mxu0 0
    %966 = vmatpush1.bf16.msra.mxu0 0
    %967 = vmatprep.subr.bf16.mxu0 0
    %968 = vmatpush1.bf16.msra.mxu0 0
    %969 = vmatprep.subr.bf16.mxu0 0
    %970 = vmatpush1.bf16.msra.mxu0 0
    %971 = vmatprep.subr.bf16.mxu0 0
    %972 = vmatpush1.bf16.msra.mxu0 0
    %973 = vmatprep.subr.bf16.mxu0 0
    %974 = vmatpush1.bf16.msra.mxu0 0
    %975 = vmatprep.subr.bf16.mxu0 0
    %976 = vmatpush1.bf16.msra.mxu0 0
    %977 = vmatprep.subr.bf16.mxu0 0
    %978 = vmatpush1.bf16.msra.mxu0 0
    %979 = vmatprep.subr.bf16.mxu0 0
    %980 = vmatpush1.bf16.msra.mxu0 0
    %981 = vmatprep.mubr.bf16.mxu0 0
    %982 = vmatmul.mubr.bf16.gmra.mrb[0].mxu0 %v947
    %v983 = vpop.f32.mrb[0].mxu0
    %v984 = vadd.f32 0.0, %v983
    %v985 = vpop.f32.mrb[0].mxu0
    %v986 = vpop.f32.mrb[0].mxu0
    %v987 = vpop.f32.mrb[0].mxu0
    %988 = vdwg.mxu0
    %990 = vrot.lane.b32.xlu0 %v320, 80
    %v991 = vpop.permute.xlu0 %990
    %v993 = vsel %vm325, %v800, 0
    %v996 = vsel %vm810, %v991, 0
    %998 = vmatprep.subr.bf16.mxu0 0
    %999 = vmatpush1.bf16.msra.mxu0 %v996
    %1000 = vmatprep.subr.bf16.mxu0 0
    %1001 = vmatpush1.bf16.msra.mxu0 0
    %1002 = vmatprep.subr.bf16.mxu0 0
    %1003 = vmatpush1.bf16.msra.mxu0 0
    %1004 = vmatprep.subr.bf16.mxu0 0
    %1005 = vmatpush1.bf16.msra.mxu0 0
    %1006 = vmatprep.subr.bf16.mxu0 0
    %1007 = vmatpush1.bf16.msra.mxu0 0
    %1008 = vmatprep.subr.bf16.mxu0 0
    %1009 = vmatpush1.bf16.msra.mxu0 0
    %1010 = vmatprep.subr.bf16.mxu0 0
    %1011 = vmatpush1.bf16.msra.mxu0 0
    %1012 = vmatprep.subr.bf16.mxu0 0
    %1013 = vmatpush1.bf16.msra.mxu0 0
    %1014 = vmatprep.subr.bf16.mxu0 0
    %1015 = vmatpush1.bf16.msra.mxu0 0
    %1016 = vmatprep.subr.bf16.mxu0 0
    %1017 = vmatpush1.bf16.msra.mxu0 0
    %1018 = vmatprep.subr.bf16.mxu0 0
    %1019 = vmatpush1.bf16.msra.mxu0 0
    %1020 = vmatprep.subr.bf16.mxu0 0
    %1021 = vmatpush1.bf16.msra.mxu0 0
    %1022 = vmatprep.subr.bf16.mxu0 0
    %1023 = vmatpush1.bf16.msra.mxu0 0
    %1024 = vmatprep.subr.bf16.mxu0 0
    %1025 = vmatpush1.bf16.msra.mxu0 0
    %1026 = vmatprep.subr.bf16.mxu0 0
    %1027 = vmatpush1.bf16.msra.mxu0 0
    %1028 = vmatprep.subr.bf16.mxu0 0
    %1029 = vmatpush1.bf16.msra.mxu0 0
    %1030 = vmatprep.mubr.bf16.mxu0 0
    %1031 = vmatmul.mubr.bf16.gmra.mrb[0].mxu0 %v993
    %v1032 = vpop.f32.mrb[0].mxu0
    %v1033 = vadd.f32 0.0, %v1032
    %v1034 = vpop.f32.mrb[0].mxu0
    %v1035 = vpop.f32.mrb[0].mxu0
    %v1036 = vpop.f32.mrb[0].mxu0
    %1037 = vdwg.mxu0
    %1039 = vrot.lane.b32.xlu0 %v321, 80
    %v1040 = vpop.permute.xlu0 %1039
    %v1042 = vsel %vm325, %v801, 0
    %v1045 = vsel %vm810, %v1040, 0
    %1047 = vmatprep.subr.bf16.mxu0 0
    %1048 = vmatpush1.bf16.msra.mxu0 %v1045
    %1049 = vmatprep.subr.bf16.mxu0 0
    %1050 = vmatpush1.bf16.msra.mxu0 0
    %1051 = vmatprep.subr.bf16.mxu0 0
    %1052 = vmatpush1.bf16.msra.mxu0 0
    %1053 = vmatprep.subr.bf16.mxu0 0
    %1054 = vmatpush1.bf16.msra.mxu0 0
    %1055 = vmatprep.subr.bf16.mxu0 0
    %1056 = vmatpush1.bf16.msra.mxu0 0
    %1057 = vmatprep.subr.bf16.mxu0 0
    %1058 = vmatpush1.bf16.msra.mxu0 0
    %1059 = vmatprep.subr.bf16.mxu0 0
    %1060 = vmatpush1.bf16.msra.mxu0 0
    %1061 = vmatprep.subr.bf16.mxu0 0
    %1062 = vmatpush1.bf16.msra.mxu0 0
    %1063 = vmatprep.subr.bf16.mxu0 0
    %1064 = vmatpush1.bf16.msra.mxu0 0
    %1065 = vmatprep.subr.bf16.mxu0 0
    %1066 = vmatpush1.bf16.msra.mxu0 0
    %1067 = vmatprep.subr.bf16.mxu0 0
    %1068 = vmatpush1.bf16.msra.mxu0 0
    %1069 = vmatprep.subr.bf16.mxu0 0
    %1070 = vmatpush1.bf16.msra.mxu0 0
    %1071 = vmatprep.subr.bf16.mxu0 0
    %1072 = vmatpush1.bf16.msra.mxu0 0
    %1073 = vmatprep.subr.bf16.mxu0 0
    %1074 = vmatpush1.bf16.msra.mxu0 0
    %1075 = vmatprep.subr.bf16.mxu0 0
    %1076 = vmatpush1.bf16.msra.mxu0 0
    %1077 = vmatprep.subr.bf16.mxu0 0
    %1078 = vmatpush1.bf16.msra.mxu0 0
    %1079 = vmatprep.mubr.bf16.mxu0 0
    %1080 = vmatmul.mubr.bf16.gmra.mrb[0].mxu0 %v1042
    %v1081 = vpop.f32.mrb[0].mxu0
    %v1082 = vadd.f32 0.0, %v1081
    %v1083 = vpop.f32.mrb[0].mxu0
    %v1084 = vpop.f32.mrb[0].mxu0
    %v1085 = vpop.f32.mrb[0].mxu0
    %1086 = vdwg.mxu0
    %v1088 = vsel %vm325, %v802, 0
    %1090 = vmatprep.subr.bf16.mxu0 0
    %1091 = vmatpush1.bf16.msra.mxu0 %v996
    %1092 = vmatprep.subr.bf16.mxu0 0
    %1093 = vmatpush1.bf16.msra.mxu0 0
    %1094 = vmatprep.subr.bf16.mxu0 0
    %1095 = vmatpush1.bf16.msra.mxu0 0
    %1096 = vmatprep.subr.bf16.mxu0 0
    %1097 = vmatpush1.bf16.msra.mxu0 0
    %1098 = vmatprep.subr.bf16.mxu0 0
    %1099 = vmatpush1.bf16.msra.mxu0 0
    %1100 = vmatprep.subr.bf16.mxu0 0
    %1101 = vmatpush1.bf16.msra.mxu0 0
    %1102 = vmatprep.subr.bf16.mxu0 0
    %1103 = vmatpush1.bf16.msra.mxu0 0
    %1104 = vmatprep.subr.bf16.mxu0 0
    %1105 = vmatpush1.bf16.msra.mxu0 0
    %1106 = vmatprep.subr.bf16.mxu0 0
    %1107 = vmatpush1.bf16.msra.mxu0 0
    %1108 = vmatprep.subr.bf16.mxu0 0
    %1109 = vmatpush1.bf16.msra.mxu0 0
    %1110 = vmatprep.subr.bf16.mxu0 0
    %1111 = vmatpush1.bf16.msra.mxu0 0
    %1112 = vmatprep.subr.bf16.mxu0 0
    %1113 = vmatpush1.bf16.msra.mxu0 0
    %1114 = vmatprep.subr.bf16.mxu0 0
    %1115 = vmatpush1.bf16.msra.mxu0 0
    %1116 = vmatprep.subr.bf16.mxu0 0
    %1117 = vmatpush1.bf16.msra.mxu0 0
    %1118 = vmatprep.subr.bf16.mxu0 0
    %1119 = vmatpush1.bf16.msra.mxu0 0
    %1120 = vmatprep.subr.bf16.mxu0 0
    %1121 = vmatpush1.bf16.msra.mxu0 0
    %1122 = vmatprep.mubr.bf16.mxu0 0
    %1123 = vmatmul.mubr.bf16.gmra.mrb[0].mxu0 %v1088
    %v1124 = vpop.f32.mrb[0].mxu0
    %v1125 = vadd.f32 0.0, %v1124
    %v1126 = vpop.f32.mrb[0].mxu0
    %v1127 = vpop.f32.mrb[0].mxu0
    %v1128 = vpop.f32.mrb[0].mxu0
    %1129 = vdwg.mxu0
    %v1131 = vsel %vm325, %v803, 0
    %1133 = vmatprep.subr.bf16.mxu0 0
    %1134 = vmatpush1.bf16.msra.mxu0 %v1045
    %1135 = vmatprep.subr.bf16.mxu0 0
    %1136 = vmatpush1.bf16.msra.mxu0 0
    %1137 = vmatprep.subr.bf16.mxu0 0
    %1138 = vmatpush1.bf16.msra.mxu0 0
    %1139 = vmatprep.subr.bf16.mxu0 0
    %1140 = vmatpush1.bf16.msra.mxu0 0
    %1141 = vmatprep.subr.bf16.mxu0 0
    %1142 = vmatpush1.bf16.msra.mxu0 0
    %1143 = vmatprep.subr.bf16.mxu0 0
    %1144 = vmatpush1.bf16.msra.mxu0 0
    %1145 = vmatprep.subr.bf16.mxu0 0
    %1146 = vmatpush1.bf16.msra.mxu0 0
    %1147 = vmatprep.subr.bf16.mxu0 0
    %1148 = vmatpush1.bf16.msra.mxu0 0
    %1149 = vmatprep.subr.bf16.mxu0 0
    %1150 = vmatpush1.bf16.msra.mxu0 0
    %1151 = vmatprep.subr.bf16.mxu0 0
    %1152 = vmatpush1.bf16.msra.mxu0 0
    %1153 = vmatprep.subr.bf16.mxu0 0
    %1154 = vmatpush1.bf16.msra.mxu0 0
    %1155 = vmatprep.subr.bf16.mxu0 0
    %1156 = vmatpush1.bf16.msra.mxu0 0
    %1157 = vmatprep.subr.bf16.mxu0 0
    %1158 = vmatpush1.bf16.msra.mxu0 0
    %1159 = vmatprep.subr.bf16.mxu0 0
    %1160 = vmatpush1.bf16.msra.mxu0 0
    %1161 = vmatprep.subr.bf16.mxu0 0
    %1162 = vmatpush1.bf16.msra.mxu0 0
    %1163 = vmatprep.subr.bf16.mxu0 0
    %1164 = vmatpush1.bf16.msra.mxu0 0
    %1165 = vmatprep.mubr.bf16.mxu0 0
    %1166 = vmatmul.mubr.bf16.gmra.mrb[0].mxu0 %v1131
    %v1167 = vpop.f32.mrb[0].mxu0
    %v1168 = vadd.f32 0.0, %v1167
    %v1169 = vpop.f32.mrb[0].mxu0
    %v1170 = vpop.f32.mrb[0].mxu0
    %v1171 = vpop.f32.mrb[0].mxu0
    %1172 = vdwg.mxu0
    %1175 = vrot.lane.b32.xlu0 %v941, 8
    %v1176 = vpop.permute.xlu0 %1175
    %1177 = vrot.lane.b32.xlu0 %v984, 8
    %v1178 = vpop.permute.xlu0 %1177
    %1183 = vrot.lane.b32.xlu0 %v1033, 16
    %v1184 = vpop.permute.xlu0 %1183
    %1185 = vrot.lane.b32.xlu0 %v1082, 16
    %v1186 = vpop.permute.xlu0 %1185
    %1191 = vrot.lane.b32.xlu0 %v1125, 24
    %v1192 = vpop.permute.xlu0 %1191
    %1193 = vrot.lane.b32.xlu0 %v1168, 24
    %v1194 = vpop.permute.xlu0 %1193
    %v1197 = vsel %vm325, %v849, %v1176
    %v1198 = vsel %vm325, %v898, %v1178
    %vm1199 = vcmask 130048
    %v1200 = vsel %vm1199, %v1197, %v1184
    %v1201 = vsel %vm1199, %v1198, %v1186
    %vm1202 = vcmask 195584
    %v1203 = vsel %vm1202, %v1200, %v1192
    %v1204 = vsel %vm1202, %v1201, %v1194
    %v1205 = vpack.c.bf16 %v1204, %v1203
    %v1206 = vld [vmem:[%s2] sm:$0xf]
    %v1207 = vld [vmem:[%s2 + $0x4] sm:$0xf]
    %v1208 = vld [vmem:[%s2 + $0x8] sm:$0xf]
    %v1209 = vld [vmem:[%s2 + $0xc] sm:$0xf]
    %v1214 = vunpack.c.l.b16 %v1206
    %v1215 = vunpack.c.l.b16 %v1207
    %v1216 = vunpack.c.l.b16 %v1208
    %v1217 = vunpack.c.l.b16 %v1209
    %v1218 = vpack.c.b16 %v1215, %v1214
    %v1219 = vpack.c.b16 %v1217, %v1216
    %v1223 = vsel %vm41, %v1205, 0
    %1225 = vmatprep.subr.bf16.mxu0 0
    %1226 = vmatpush1.bf16.msra.mxu0 %v1218
    %1227 = vmatprep.subr.bf16.mxu0 0
    %1228 = vmatpush1.bf16.msra.mxu0 %v1219
    %1229 = vmatprep.subr.bf16.mxu0 0
    %1230 = vmatpush1.bf16.msra.mxu0 0
    %1231 = vmatprep.subr.bf16.mxu0 0
    %1232 = vmatpush1.bf16.msra.mxu0 0
    %1233 = vmatprep.subr.bf16.mxu0 0
    %1234 = vmatpush1.bf16.msra.mxu0 0
    %1235 = vmatprep.subr.bf16.mxu0 0
    %1236 = vmatpush1.bf16.msra.mxu0 0
    %1237 = vmatprep.subr.bf16.mxu0 0
    %1238 = vmatpush1.bf16.msra.mxu0 0
    %1239 = vmatprep.subr.bf16.mxu0 0
    %1240 = vmatpush1.bf16.msra.mxu0 0
    %1241 = vmatprep.subr.bf16.mxu0 0
    %1242 = vmatpush1.bf16.msra.mxu0 0
    %1243 = vmatprep.subr.bf16.mxu0 0
    %1244 = vmatpush1.bf16.msra.mxu0 0
    %1245 = vmatprep.subr.bf16.mxu0 0
    %1246 = vmatpush1.bf16.msra.mxu0 0
    %1247 = vmatprep.subr.bf16.mxu0 0
    %1248 = vmatpush1.bf16.msra.mxu0 0
    %1249 = vmatprep.subr.bf16.mxu0 0
    %1250 = vmatpush1.bf16.msra.mxu0 0
    %1251 = vmatprep.subr.bf16.mxu0 0
    %1252 = vmatpush1.bf16.msra.mxu0 0
    %1253 = vmatprep.subr.bf16.mxu0 0
    %1254 = vmatpush1.bf16.msra.mxu0 0
    %1255 = vmatprep.subr.bf16.mxu0 0
    %1256 = vmatpush1.bf16.msra.mxu0 0
    %1257 = vmatprep.mubr.bf16.mxu0 0
    %1258 = vmatmul.mubr.bf16.gmra.mrb[0].mxu0 %v1223
    %v1259 = vpop.f32.mrb[0].mxu0
    %v1260 = vadd.f32 0.0, %v1259
    %v1261 = vpop.f32.mrb[0].mxu0
    %v1262 = vpop.f32.mrb[0].mxu0
    %v1263 = vadd.f32 0.0, %v1262
    %v1264 = vpop.f32.mrb[0].mxu0
    %1265 = vdwg.mxu0
    %v1266 = vadd.f32 %v37, %v1260
    %v1267 = vadd.f32 %v38, %v1263
    %v1268 = vmul.f32 %v1266, %v1266
    %v1269 = vmul.f32 %v1267, %v1267
    %v1270 = vsel %vm41, %v1268, 0.0
    %1271 = vadd.xlane.f32.xlu0 %v1270
    %v1272 = vpop.xlane.xlu0 %1271
    %v1273 = vsel %vm41, %v1269, 0.0
    %1274 = vadd.xlane.f32.xlu0 %v1273
    %v1275 = vpop.xlane.xlu0 %1274
    %v1276 = vmul.f32 %v1272, %v48
    %v1277 = vmul.f32 %v1275, %v48
    %v1278 = vadd.f32 %v1276, 1e-05
    %v1279 = vadd.f32 %v1277, 1e-05
    %v1280 = vrsqrt.pop %v1278
    %v1281 = vrsqrt.pop %v1279
    %v1282 = vmul.f32 %v1266, %v1280
    %v1283 = vmul.f32 %v1267, %v1281
    %v1284 = vld [vmem:[%s6] sm:$0x1]
    %v1286 = vlaneseq
    %v1287 = vshrl.u32 %v1286, 7
    %v1288 = vsub.s32 0, %v1287
    %v1289 = vrot.slane %v1284, %v1288
    %v1291 = vmul.f32 %v1282, %v1289
    %v1292 = vmul.f32 %v1283, %v1289
    %v1293 = vpack.c.bf16 %v1292, %v1291
    %v1294 = vld [vmem:[%s3] sm:$0xf]
    %v1295 = vld [vmem:[%s3 + $0x4] sm:$0xf]
    %v1296 = vld [vmem:[%s3 + $0x8] sm:$0xf]
    %v1297 = vld [vmem:[%s3 + $0xc] sm:$0xf]
    %v1302 = vunpack.c.l.b16 %v1294
    %v1303 = vunpack.c.l.b16 %v1295
    %v1304 = vunpack.c.l.b16 %v1296
    %v1305 = vunpack.c.l.b16 %v1297
    %v1306 = vpack.c.b16 %v1303, %v1302
    %v1307 = vpack.c.b16 %v1305, %v1304
    %v1311 = vsel %vm41, %v1293, 0
    %1313 = vmatprep.subr.bf16.mxu0 0
    %1314 = vmatpush1.bf16.msra.mxu0 %v1306
    %1315 = vmatprep.subr.bf16.mxu0 0
    %1316 = vmatpush1.bf16.msra.mxu0 %v1307
    %1317 = vmatprep.subr.bf16.mxu0 0
    %1318 = vmatpush1.bf16.msra.mxu0 0
    %1319 = vmatprep.subr.bf16.mxu0 0
    %1320 = vmatpush1.bf16.msra.mxu0 0
    %1321 = vmatprep.subr.bf16.mxu0 0
    %1322 = vmatpush1.bf16.msra.mxu0 0
    %1323 = vmatprep.subr.bf16.mxu0 0
    %1324 = vmatpush1.bf16.msra.mxu0 0
    %1325 = vmatprep.subr.bf16.mxu0 0
    %1326 = vmatpush1.bf16.msra.mxu0 0
    %1327 = vmatprep.subr.bf16.mxu0 0
    %1328 = vmatpush1.bf16.msra.mxu0 0
    %1329 = vmatprep.subr.bf16.mxu0 0
    %1330 = vmatpush1.bf16.msra.mxu0 0
    %1331 = vmatprep.subr.bf16.mxu0 0
    %1332 = vmatpush1.bf16.msra.mxu0 0
    %1333 = vmatprep.subr.bf16.mxu0 0
    %1334 = vmatpush1.bf16.msra.mxu0 0
    %1335 = vmatprep.subr.bf16.mxu0 0
    %1336 = vmatpush1.bf16.msra.mxu0 0
    %1337 = vmatprep.subr.bf16.mxu0 0
    %1338 = vmatpush1.bf16.msra.mxu0 0
    %1339 = vmatprep.subr.bf16.mxu0 0
    %1340 = vmatpush1.bf16.msra.mxu0 0
    %1341 = vmatprep.subr.bf16.mxu0 0
    %1342 = vmatpush1.bf16.msra.mxu0 0
    %1343 = vmatprep.subr.bf16.mxu0 0
    %1344 = vmatpush1.bf16.msra.mxu0 0
    %1345 = vmatprep.mubr.bf16.mxu0 0
    %1346 = vmatmul.mubr.bf16.gmra.mrb[0].mxu0 %v1311
    %v1347 = vpop.f32.mrb[0].mxu0
    %v1348 = vadd.f32 0.0, %v1347
    %v1349 = vpop.f32.mrb[0].mxu0
    %v1350 = vpop.f32.mrb[0].mxu0
    %v1351 = vadd.f32 0.0, %v1350
    %v1352 = vpop.f32.mrb[0].mxu0
    %1353 = vdwg.mxu0
    %v1354 = vxor.u32 %v1348, 2147483648
    %v1355 = vxor.u32 %v1351, 2147483648
    %v1356 = vmul.f32 %v1354, 1.442695
    %v1357 = vpow.pop %v1356
    %v1358 = vmul.f32 %v1355, 1.442695
    %v1359 = vpow.pop %v1358
    %v1360 = vadd.f32 %v1357, 1.0
    %v1361 = vadd.f32 %v1359, 1.0
    %v1362 = vrcp.pop %v1360
    %v1363 = vmul.f32 1.0, %v1362
    %v1364 = vrcp.pop %v1361
    %v1365 = vmul.f32 1.0, %v1364
    %v1366 = vmul.f32 %v1348, %v1363
    %v1367 = vmul.f32 %v1351, %v1365
    %1370 = vrot.lane.b32.xlu0 %v1348, 64
    %v1371 = vpop.permute.xlu0 %1370
    %1372 = vrot.lane.b32.xlu0 %v1351, 64
    %v1373 = vpop.permute.xlu0 %1372
    %v1376 = vmul.f32 %v1366, %v1371
    %v1377 = vmul.f32 %v1367, %v1373
    %v1378 = vpack.c.bf16 %v1377, %v1376
    %v1379 = vld [vmem:[%s4] sm:$0xf]
    %v1380 = vld [vmem:[%s4 + $0x4] sm:$0xf]
    %v1381 = vld [vmem:[%s4 + $0x8] sm:$0xf]
    %v1382 = vld [vmem:[%s4 + $0xc] sm:$0xf]
    %v1383 = vld [vmem:[%s4 + $0x10] sm:$0xf]
    %v1384 = vld [vmem:[%s4 + $0x14] sm:$0xf]
    %v1385 = vld [vmem:[%s4 + $0x18] sm:$0xf]
    %v1386 = vld [vmem:[%s4 + $0x1c] sm:$0xf]
    %v1395 = vunpack.c.l.b16 %v1379
    %v1396 = vunpack.c.l.b16 %v1380
    %v1397 = vunpack.c.l.b16 %v1381
    %v1398 = vunpack.c.l.b16 %v1382
    %v1399 = vunpack.c.l.b16 %v1383
    %v1400 = vunpack.c.l.b16 %v1384
    %v1401 = vunpack.c.l.b16 %v1385
    %v1402 = vunpack.c.l.b16 %v1386
    %v1403 = vpack.c.b16 %v1396, %v1395
    %v1404 = vpack.c.b16 %v1398, %v1397
    %v1405 = vpack.c.b16 %v1400, %v1399
    %v1406 = vpack.c.b16 %v1402, %v1401
    %vm1411 = vcmask 523264
    %v1413 = vsel %vm1411, %v1378, 0
    %1415 = vmatprep.subr.bf16.mxu0 0
    %1416 = vmatpush1.bf16.msra.mxu0 %v1403
    %1417 = vmatprep.subr.bf16.mxu0 0
    %1418 = vmatpush1.bf16.msra.mxu0 %v1404
    %1419 = vmatprep.subr.bf16.mxu0 0
    %1420 = vmatpush1.bf16.msra.mxu0 %v1405
    %1421 = vmatprep.subr.bf16.mxu0 0
    %1422 = vmatpush1.bf16.msra.mxu0 %v1406
    %1423 = vmatprep.subr.bf16.mxu0 0
    %1424 = vmatpush1.bf16.msra.mxu0 0
    %1425 = vmatprep.subr.bf16.mxu0 0
    %1426 = vmatpush1.bf16.msra.mxu0 0
    %1427 = vmatprep.subr.bf16.mxu0 0
    %1428 = vmatpush1.bf16.msra.mxu0 0
    %1429 = vmatprep.subr.bf16.mxu0 0
    %1430 = vmatpush1.bf16.msra.mxu0 0
    %1431 = vmatprep.subr.bf16.mxu0 0
    %1432 = vmatpush1.bf16.msra.mxu0 0
    %1433 = vmatprep.subr.bf16.mxu0 0
    %1434 = vmatpush1.bf16.msra.mxu0 0
    %1435 = vmatprep.subr.bf16.mxu0 0
    %1436 = vmatpush1.bf16.msra.mxu0 0
    %1437 = vmatprep.subr.bf16.mxu0 0
    %1438 = vmatpush1.bf16.msra.mxu0 0
    %1439 = vmatprep.subr.bf16.mxu0 0
    %1440 = vmatpush1.bf16.msra.mxu0 0
    %1441 = vmatprep.subr.bf16.mxu0 0
    %1442 = vmatpush1.bf16.msra.mxu0 0
    %1443 = vmatprep.subr.bf16.mxu0 0
    %1444 = vmatpush1.bf16.msra.mxu0 0
    %1445 = vmatprep.subr.bf16.mxu0 0
    %1446 = vmatpush1.bf16.msra.mxu0 0
    %1447 = vmatprep.mubr.bf16.mxu0 0
    %1448 = vmatmul.mubr.bf16.gmra.mrb[0].mxu0 %v1413
    %v1449 = vpop.f32.mrb[0].mxu0
    %v1450 = vadd.f32 0.0, %v1449
    %v1451 = vpop.f32.mrb[0].mxu0
    %v1452 = vpop.f32.mrb[0].mxu0
    %v1453 = vadd.f32 0.0, %v1452
    %v1454 = vpop.f32.mrb[0].mxu0
    %1455 = vdwg.mxu0
    %v1456 = vadd.f32 %v1266, %v1450
    %v1457 = vadd.f32 %v1267, %v1453
    %1458 = vst.msk [vmem:[#allocation2] sm:$0xff] %vm41, %v1456
    %1459 = vst.msk [vmem:[#allocation2 + $0x8] sm:$0xff] %vm41, %v1457
    // Predicated region
    $region42: #{transformer_block.1} parent=1 // pred_check
      _
    $region43: #{transformer_block.1} parent=1 // pred_check_branch
      %1461 = sbr.rel (0) target = $region45
    $region44: #{transformer_block.1} parent=1 // pred_region
      %s1463 = ssub.s32 256, 256
      %1464 = vsyncadd [#allocation3], %s1463
      %s1465 = sshll.u32 [#allocation2], 4
      %s1466 = int_to_ptr.vmem [resolvable:$true] %s1465
      %1471 = dma.vmem_to_hbm [thread:$0]  %s1466, 256, %s10, [#allocation3], 128, 128, 8
    $region45: #{transformer_block.1} parent=1 // pred_fallthru
      _
    // Predicated region
    $region46: #{transformer_block.1} parent=1 // pred_check
      _
    $region47: #{transformer_block.1} parent=1 // pred_check_branch
      %1473 = sbr.rel (0) target = $region49
    $region48: #{transformer_block.1} parent=1 // pred_region
      %1474 = dma.done [#allocation3], 256
    $region49: #{transformer_block.1} parent=1 // pred_fallthru
      _
    %1475 = vsyncpa [#allocation3], 1

</llo_original>
